<compile_context>
chip_gen: v5e
topology: v5e:2x2
jax: 0.10.0
libtpu: 0.0.40
codegen_flags: <defaults>
</compile_context>

<pallas_src>
import functools

import jax
import jax.numpy as jnp
from jax import lax
from jax.experimental import pallas as pl
from jax.experimental.pallas import tpu as pltpu

IS_RELU_HIDDEN = 1
IS_RELU_HIDDEN_AND_OUT = 2

_LANE = 128
_SUBLANE = 8


def _round_up(x, m):
    return (x + m - 1) // m * m


# ----------------------------------------------------------------------------
# Parameter init (mirrors PyTorch layouts) and one-time prep: transpose,
# combine b_ih+b_hh, pack the 4 gates into ceil(4H/128) lane tiles, cast
# matmul weights to bf16 (biases stay f32).
# ----------------------------------------------------------------------------
def init_params(key, insize, outsize, hidsize, numlstm, numffn):
    """Deterministic init mirroring PyTorch's U(-1/sqrt(H), 1/sqrt(H))."""
    params = {"lstm": [], "ffn": []}
    bound = 1.0 / jnp.sqrt(jnp.float32(hidsize))

    def u(k, shape, b):
        return jax.random.uniform(k, shape, jnp.float32, -b, b)

    for layer in range(numlstm):
        in_f = insize if layer == 0 else hidsize
        key, k1, k2, k3, k4 = jax.random.split(key, 5)
        params["lstm"].append(
            dict(
                w_ih=u(k1, (4 * hidsize, in_f), bound),   # PyTorch layout (4H, F_in)
                w_hh=u(k2, (4 * hidsize, hidsize), bound),
                b_ih=u(k3, (4 * hidsize,), bound),
                b_hh=u(k4, (4 * hidsize,), bound),
            )
        )

    dims = [hidsize] * numffn + [outsize]
    for layer in range(numffn):
        f_in, f_out = dims[layer], dims[layer + 1]
        fan_bound = 1.0 / jnp.sqrt(jnp.float32(f_in))
        key, k1, k2 = jax.random.split(key, 3)
        params["ffn"].append(
            dict(
                w=u(k1, (f_out, f_in), fan_bound),        # PyTorch layout (out, in)
                b=u(k2, (f_out,), fan_bound),
            )
        )
    return params


def prepare_params(params, insize, hidsize):
    """One-time weight preprocessing (call once, reuse every forward)."""
    H = hidsize
    G = 4 * H
    Gp = _round_up(G, _LANE)                      # packed-gate lane width

    prepped = {"lstm": [], "ffn": []}
    for layer, lp in enumerate(params["lstm"]):
        f_in = insize if layer == 0 else H
        # Only layer 0's input feature dim is lane-padded (it comes from HBM);
        # deeper layers consume the H-wide hseq scratch directly.
        f_in_p = _round_up(f_in, _LANE) if layer == 0 else f_in
        w_ih_t = jnp.zeros((f_in_p, Gp), jnp.float32)
        w_ih_t = w_ih_t.at[:f_in, :G].set(jnp.transpose(lp["w_ih"]))
        w_hh_t = jnp.zeros((H, Gp), jnp.float32)
        w_hh_t = w_hh_t.at[:, :G].set(jnp.transpose(lp["w_hh"]))
        bias = jnp.zeros((1, Gp), jnp.float32)
        bias = bias.at[0, :G].set(lp["b_ih"] + lp["b_hh"])
        prepped["lstm"].append((
            w_ih_t.astype(jnp.bfloat16),              # (F_in_p, Gp) bf16
            w_hh_t.astype(jnp.bfloat16),              # (H,      Gp) bf16
            bias,                                     # (1,      Gp) f32
        ))

    n_ffn = len(params["ffn"])
    for j, fp in enumerate(params["ffn"]):
        f_out, f_in = fp["w"].shape
        # Only the final output dim is lane-padded (lane-dense out store).
        out_p = _round_up(f_out, _LANE) if j == n_ffn - 1 else f_out
        w_p = jnp.zeros((f_in, out_p), jnp.float32).at[:, :f_out].set(
            jnp.transpose(fp["w"]))
        b_p = jnp.zeros((1, out_p), jnp.float32).at[0, :f_out].set(fp["b"])
        prepped["ffn"].append((w_p.astype(jnp.bfloat16), b_p))
    return prepped


# ----------------------------------------------------------------------------
# Fused kernel: per sequence chunk, all LSTM layers + all FFN linears.
# Refs: x, (w_ih, w_hh, bias)*numlstm, (w, b)*numffn, out,
#       hseq_sc, gx_sc, h_state_sc, c_state_sc.
# Data layout inside: time-major rows, i.e. row (t*Bp + b) of every slab.
# ----------------------------------------------------------------------------
def _make_fused_kernel(num_lstm, num_ffn, chunk, bpad, hid, relu_flags):
    H = hid
    unroll = True if chunk <= 8 else 8

    def kernel(*refs):
        idx = 0
        x_ref = refs[idx]; idx += 1
        lstm_w = []
        for _ in range(num_lstm):
            lstm_w.append(refs[idx:idx + 3]); idx += 3
        ffn_w = []
        for _ in range(num_ffn):
            ffn_w.append(refs[idx:idx + 2]); idx += 2
        out_ref = refs[idx]
        hseq = refs[idx + 1]     # (chunk*Bp, H)   f32  current layer's h chunk
        gx = refs[idx + 2]       # (chunk*Bp, Gp)  f32  precomputed x @ W_ih + b
        h_st = refs[idx + 3]     # (num_lstm, Bp, H) f32 carried across chunks
        c_st = refs[idx + 4]

        @pl.when(pl.program_id(0) == 0)
        def _():
            h_st[...] = jnp.zeros_like(h_st)
            c_st[...] = jnp.zeros_like(c_st)

        cur = x_ref[...]                               # bf16 (chunk*Bp, F_in_p)
        for l, (wih_ref, whh_ref, b_ref) in enumerate(lstm_w):
            # Input projection for the whole chunk in a single MXU call.
            gx[...] = (
                jnp.dot(cur, wih_ref[...], preferred_element_type=jnp.float32)
                + b_ref[...]
            )
            whh = whh_ref[...]                         # bf16 (H, Gp), tiny
            # TODO(synk): pltpu.matmul_push_rhs once per layer + matmul_acc_lhs
            #             per step to avoid re-pushing W_hh every timestep.

            # Hoisted lane mask: lanes [2H, 3H) are the g-gate (tanh), the
            # rest (i, f, o) get sigmoid.
            lane = lax.broadcasted_iota(jnp.int32, (bpad, gx.shape[1]), 1)
            is_g = (lane >= 2 * H) & (lane < 3 * H)

            def step(t, carry, whh=whh, is_g=is_g):
                h, c = carry                           # f32 (Bp, H)
                row = pl.multiple_of(t * bpad, _SUBLANE)
                pre = gx[pl.ds(row, bpad), :] + jnp.dot(
                    h.astype(jnp.bfloat16), whh,
                    preferred_element_type=jnp.float32)
                # One EUP push per step: sigmoid(x) = 0.5*(tanh(x/2)+1).
                t_all = jnp.tanh(jnp.where(is_g, pre, 0.5 * pre))
                act = jnp.where(is_g, t_all, 0.5 * (t_all + 1.0))
                i_g = act[:, 0 * H:1 * H]
                f_g = act[:, 1 * H:2 * H]
                g_g = act[:, 2 * H:3 * H]
                o_g = act[:, 3 * H:4 * H]
                c_new = f_g * c + i_g * g_g
                h_new = o_g * jnp.tanh(c_new)
                hseq[pl.ds(row, bpad), :] = h_new
                return (h_new, c_new)

            h_f, c_f = lax.fori_loop(0, chunk, step, (h_st[l], c_st[l]),
                                     unroll=unroll)
            h_st[l] = h_f
            c_st[l] = c_f
            cur = hseq[...].astype(jnp.bfloat16)       # next layer's input

        # Pointwise FFN over the chunk rows (row order irrelevant).
        act = cur
        for j, (w_ref, b_ref) in enumerate(ffn_w):
            z = jnp.dot(act, w_ref[...],
                        preferred_element_type=jnp.float32) + b_ref[...]
            if relu_flags[j]:
                z = jnp.maximum(z, 0.0)
            act = z if j == num_ffn - 1 else z.astype(jnp.bfloat16)
        out_ref[...] = act                             # lane-dense f32 store

    return kernel


def _pick_seq_chunk(S, Bp, F0p, Gp, H, OUTp, weight_bytes, num_lstm,
                    budget_bytes=40 * 2**20):
    """Largest chunk whose VMEM footprint stays inside a conservative budget."""
    fixed = 2 * weight_bytes + 2 * num_lstm * Bp * H * 4
    per_step = Bp * (2 * F0p * 2      # x block (bf16, double-buffered)
                     + 2 * OUTp * 4   # out block (f32, double-buffered)
                     + H * 4          # hseq
                     + Gp * 4)        # gx
    avail = max(budget_bytes - fixed, per_step)
    return int(max(1, min(S, avail // per_step)))


@functools.partial(jax.jit, static_argnames=("outsize", "activation", "seq_chunk"))
def itw_lstm_forward(prepped, x_bsf, *, outsize, activation, seq_chunk=None):
    """x_bsf: batch-first (B, S, insize) -> (B, S, outsize)."""
    B, S, F = x_bsf.shape
    Bp = _round_up(B, _SUBLANE)
    num_lstm = len(prepped["lstm"])
    num_ffn = len(prepped["ffn"])
    F0p = prepped["lstm"][0][0].shape[0]
    H = prepped["lstm"][0][1].shape[0]
    Gp = prepped["lstm"][0][1].shape[1]
    OUTp = prepped["ffn"][-1][0].shape[1]
    relu_flags = tuple(
        (activation >= IS_RELU_HIDDEN and j < num_ffn - 1)
        or (activation >= IS_RELU_HIDDEN_AND_OUT and j == num_ffn - 1)
        for j in range(num_ffn)
    )

    flat_w = []
    for triple in prepped["lstm"]:
        flat_w.extend(triple)
    for pair in prepped["ffn"]:
        flat_w.extend(pair)
    weight_bytes = sum(int(w.size) * w.dtype.itemsize for w in flat_w)

    chunk = seq_chunk if seq_chunk is not None else _pick_seq_chunk(
        S, Bp, F0p, Gp, H, OUTp, weight_bytes, num_lstm)
    chunk = max(1, min(int(chunk), S))
    n_chunks = pl.cdiv(S, chunk)
    Sp = n_chunks * chunk

    # (B,S,F) -> time-major (S,B,F); pad seq->chunk multiple, batch->8
    # sublanes, feat->128 lanes; flatten to one (Sp*Bp, F0p) bf16 slab.
    x = jnp.transpose(x_bsf, (1, 0, 2))
    x = jnp.pad(x, ((0, Sp - S), (0, Bp - B), (0, F0p - F)))
    x = x.reshape(Sp * Bp, F0p).astype(jnp.bfloat16)

    rows = chunk * Bp
    in_specs = [pl.BlockSpec((rows, F0p), lambda c: (c, 0))]
    for w in flat_w:
        in_specs.append(pl.BlockSpec(w.shape, lambda c: (0, 0)))

    vmem_est = (2 * rows * F0p * 2 + 2 * rows * OUTp * 4
                + rows * H * 4 + rows * Gp * 4
                + 2 * num_lstm * Bp * H * 4 + 2 * weight_bytes)
    vmem_limit = int(min(max(4 * vmem_est, 16 * 2**20), 64 * 2**20))

    kernel = _make_fused_kernel(num_lstm, num_ffn, chunk, Bp, H, relu_flags)

    out = pl.pallas_call(
        kernel,
        out_shape=jax.ShapeDtypeStruct((Sp * Bp, OUTp), jnp.float32),
        grid=(n_chunks,),
        in_specs=in_specs,
        out_specs=pl.BlockSpec((rows, OUTp), lambda c: (c, 0)),
        scratch_shapes=[
            pltpu.VMEM((rows, H), jnp.float32),           # h sequence (per layer)
            pltpu.VMEM((rows, Gp), jnp.float32),          # packed gate slab
            pltpu.VMEM((num_lstm, Bp, H), jnp.float32),   # h carry across chunks
            pltpu.VMEM((num_lstm, Bp, H), jnp.float32),   # c carry across chunks
        ],
        compiler_params=pltpu.CompilerParams(
            dimension_semantics=("arbitrary",),
            vmem_limit_bytes=vmem_limit),
    )(x, *flat_w)

    # Only the tiny final result gets sliced/transposed back to batch-first.
    out = out.reshape(Sp, Bp, OUTp)[:S, :B, :outsize]
    return jnp.transpose(out, (1, 0, 2))


# ----------------------------------------------------------------------------
# Pure-JAX reference (lax.scan LSTM).  mxu_dtype=bfloat16 reproduces the
# kernel's bf16-operand / f32-accumulate matmuls exactly; float32 gives the
# full-precision module semantics for a looser sanity check.
# ----------------------------------------------------------------------------
def reference_forward(params, x_bsf, activation, mxu_dtype=jnp.float32):
    def mm(a, b):
        return jnp.dot(a.astype(mxu_dtype), b.astype(mxu_dtype),
                       preferred_element_type=jnp.float32)

    h_seq = jnp.transpose(x_bsf, (1, 0, 2))  # (S, B, F)
    for lp in params["lstm"]:
        H = lp["w_hh"].shape[1]
        w_ih_t = jnp.transpose(lp["w_ih"])
        w_hh_t = jnp.transpose(lp["w_hh"])
        bias = lp["b_ih"] + lp["b_hh"]

        def step(carry, x_t, w_ih_t=w_ih_t, w_hh_t=w_hh_t, bias=bias, H=H):
            h, c = carry
            gates = mm(x_t, w_ih_t) + mm(h, w_hh_t) + bias
            i = jax.nn.sigmoid(gates[:, 0 * H:1 * H])
            f = jax.nn.sigmoid(gates[:, 1 * H:2 * H])
            g = jnp.tanh(gates[:, 2 * H:3 * H])
            o = jax.nn.sigmoid(gates[:, 3 * H:4 * H])
            c = f * c + i * g
            h = o * jnp.tanh(c)
            return (h, c), h

        B = h_seq.shape[1]
        init = (jnp.zeros((B, H), jnp.float32), jnp.zeros((B, H), jnp.float32))
        _, h_seq = jax.lax.scan(step, init, h_seq)
    out = jnp.transpose(h_seq, (1, 0, 2))
    numffn = len(params["ffn"])
    for idx, fp in enumerate(params["ffn"]):
        is_last = idx == numffn - 1
        out = mm(out, jnp.transpose(fp["w"])) + fp["b"]
        if (activation >= IS_RELU_HIDDEN and not is_last) or (
            activation >= IS_RELU_HIDDEN_AND_OUT and is_last
        ):
            out = jnp.maximum(out, 0.0)
    return out


if __name__ == "__main__":
    insize, outsize, hidsize = 8, 4, 32
    numlstm, numffn = 2, 3
    activation = IS_RELU_HIDDEN  # ReLU on hidden FFN layers, linear output.
    batch, seq = 2, 8

    key = jax.random.PRNGKey(0)
    key, pkey, xkey = jax.random.split(key, 3)
    params = init_params(pkey, insize, outsize, hidsize, numlstm, numffn)
    x = jax.random.normal(xkey, (batch, seq, insize), jnp.float32)

    prepped = prepare_params(params, insize, hidsize)   # hoisted: run once
    # seq_chunk=4 forces 2 grid chunks so the cross-chunk h/c carry is tested.
    out = itw_lstm_forward(prepped, x, outsize=outsize, activation=activation,
                           seq_chunk=4)
    out = jax.block_until_ready(out)
    assert out.shape == (batch, seq, outsize), out.shape

    # Tight check vs. a reference that uses the same bf16-operand matmuls.
    ref_bf16 = jax.block_until_ready(
        reference_forward(params, x, activation, mxu_dtype=jnp.bfloat16))
    assert jnp.allclose(out, ref_bf16, rtol=1e-3, atol=1e-3), (
        float(jnp.max(jnp.abs(out - ref_bf16))))

    # Looser sanity check vs. the full-f32 module semantics.
    ref_f32 = jax.block_until_ready(
        reference_forward(params, x, activation, mxu_dtype=jnp.float32))
    assert jnp.allclose(out, ref_f32, rtol=3e-2, atol=3e-2), (
        float(jnp.max(jnp.abs(out - ref_f32))))

    print("KERNEL_OK")
</pallas_src>

<mosaic_0001>
module attributes {stable_mosaic.version = 11 : i64} {
  func.func @kernel(%arg0: i32, %arg1: memref<32x128xbf16, #tpu.memory_space<vmem>>, %arg2: memref<128x128xbf16, #tpu.memory_space<vmem>>, %arg3: memref<32x128xbf16, #tpu.memory_space<vmem>>, %arg4: memref<1x128xf32, #tpu.memory_space<vmem>>, %arg5: memref<32x128xbf16, #tpu.memory_space<vmem>>, %arg6: memref<32x128xbf16, #tpu.memory_space<vmem>>, %arg7: memref<1x128xf32, #tpu.memory_space<vmem>>, %arg8: memref<32x32xbf16, #tpu.memory_space<vmem>>, %arg9: memref<1x32xf32, #tpu.memory_space<vmem>>, %arg10: memref<32x32xbf16, #tpu.memory_space<vmem>>, %arg11: memref<1x32xf32, #tpu.memory_space<vmem>>, %arg12: memref<32x128xbf16, #tpu.memory_space<vmem>>, %arg13: memref<1x128xf32, #tpu.memory_space<vmem>>, %arg14: memref<32x128xf32, #tpu.memory_space<vmem>>, %arg15: memref<32x32xf32, #tpu.memory_space<vmem>>, %arg16: memref<32x128xf32, #tpu.memory_space<vmem>>, %arg17: memref<2x8x32xf32, #tpu.memory_space<vmem>>, %arg18: memref<2x8x32xf32, #tpu.memory_space<vmem>>) attributes {dimension_semantics = [#tpu.dimension_semantics<arbitrary>], iteration_bounds = array<i64: 2>, scalar_prefetch = 0 : i64, scratch_operands = 4 : i64, tpu.core_type = #tpu.core_type<tc>, window_params = [{transform_indices = @transform_0, window_bounds = array<i64: 32, 128>}, {pipeline_mode = #tpu.pipeline_mode<synchronous>, transform_indices = @transform_1, window_bounds = array<i64: 128, 128>}, {pipeline_mode = #tpu.pipeline_mode<synchronous>, transform_indices = @transform_2, window_bounds = array<i64: 32, 128>}, {pipeline_mode = #tpu.pipeline_mode<synchronous>, transform_indices = @transform_3, window_bounds = array<i64: 1, 128>}, {pipeline_mode = #tpu.pipeline_mode<synchronous>, transform_indices = @transform_4, window_bounds = array<i64: 32, 128>}, {pipeline_mode = #tpu.pipeline_mode<synchronous>, transform_indices = @transform_5, window_bounds = array<i64: 32, 128>}, {pipeline_mode = #tpu.pipeline_mode<synchronous>, transform_indices = @transform_6, window_bounds = array<i64: 1, 128>}, {pipeline_mode = #tpu.pipeline_mode<synchronous>, transform_indices = @transform_7, window_bounds = array<i64: 32, 32>}, {pipeline_mode = #tpu.pipeline_mode<synchronous>, transform_indices = @transform_8, window_bounds = array<i64: 1, 32>}, {pipeline_mode = #tpu.pipeline_mode<synchronous>, transform_indices = @transform_9, window_bounds = array<i64: 32, 32>}, {pipeline_mode = #tpu.pipeline_mode<synchronous>, transform_indices = @transform_10, window_bounds = array<i64: 1, 32>}, {pipeline_mode = #tpu.pipeline_mode<synchronous>, transform_indices = @transform_11, window_bounds = array<i64: 32, 128>}, {pipeline_mode = #tpu.pipeline_mode<synchronous>, transform_indices = @transform_12, window_bounds = array<i64: 1, 128>}, {transform_indices = @transform_13, window_bounds = array<i64: 32, 128>}]} {
    %c0_i32 = arith.constant 0 : i32
    %0 = arith.cmpi eq, %arg0, %c0_i32 : i32
    %1 = arith.extui %0 : i1 to i32
    %c0_i32_0 = arith.constant 0 : i32
    %2 = arith.cmpi ne, %1, %c0_i32_0 : i32
    scf.if %2 {
      %cst_128 = arith.constant 0.000000e+00 : f32
      %292 = vector.broadcast %cst_128 : f32 to vector<2x8x32xf32>
      %c0_129 = arith.constant 0 : index
      %c0_130 = arith.constant 0 : index
      %c0_131 = arith.constant 0 : index
      %293 = vector.load %arg17[%c0_129, %c0_130, %c0_131] : memref<2x8x32xf32, #tpu.memory_space<vmem>>, vector<2x8x32xf32>
      tpu.vector_store %arg17[%c0_129, %c0_130, %c0_131], %292 {strides = array<i32>} : memref<2x8x32xf32, #tpu.memory_space<vmem>>, vector<2x8x32xf32>,
      %cst_132 = arith.constant 0.000000e+00 : f32
      %294 = vector.broadcast %cst_132 : f32 to vector<2x8x32xf32>
      %c0_133 = arith.constant 0 : index
      %c0_134 = arith.constant 0 : index
      %c0_135 = arith.constant 0 : index
      %295 = vector.load %arg18[%c0_133, %c0_134, %c0_135] : memref<2x8x32xf32, #tpu.memory_space<vmem>>, vector<2x8x32xf32>
      tpu.vector_store %arg18[%c0_133, %c0_134, %c0_135], %294 {strides = array<i32>} : memref<2x8x32xf32, #tpu.memory_space<vmem>>, vector<2x8x32xf32>,
    } else {
    }
    %c0 = arith.constant 0 : index
    %c0_1 = arith.constant 0 : index
    %3 = vector.load %arg1[%c0, %c0_1] : memref<32x128xbf16, #tpu.memory_space<vmem>>, vector<32x128xbf16>
    %c0_2 = arith.constant 0 : index
    %c0_3 = arith.constant 0 : index
    %4 = vector.load %arg2[%c0_2, %c0_3] : memref<128x128xbf16, #tpu.memory_space<vmem>>, vector<128x128xbf16>
    %cst = arith.constant dense<0.000000e+00> : vector<32x128xf32>
    %5 = tpu.matmul %3, %4, %cst {dimension_numbers = #tpu.dot_dimension_numbers<[1], [0], [0], [1], [0, 0, 1, 1], [], []>} : vector<32x128xbf16>, vector<128x128xbf16>, vector<32x128xf32> -> vector<32x128xf32>
    %c0_4 = arith.constant 0 : index
    %c0_5 = arith.constant 0 : index
    %6 = vector.load %arg4[%c0_4, %c0_5] : memref<1x128xf32, #tpu.memory_space<vmem>>, vector<1x128xf32>
    %7 = vector.broadcast %6 : vector<1x128xf32> to vector<32x128xf32>
    %8 = arith.addf %5, %7 : vector<32x128xf32>
    %c0_6 = arith.constant 0 : index
    %c0_7 = arith.constant 0 : index
    %9 = vector.load %arg16[%c0_6, %c0_7] : memref<32x128xf32, #tpu.memory_space<vmem>>, vector<32x128xf32>
    tpu.vector_store %arg16[%c0_6, %c0_7], %8 {strides = array<i32>} : memref<32x128xf32, #tpu.memory_space<vmem>>, vector<32x128xf32>,
    %c0_8 = arith.constant 0 : index
    %c0_9 = arith.constant 0 : index
    %10 = vector.load %arg3[%c0_8, %c0_9] : memref<32x128xbf16, #tpu.memory_space<vmem>>, vector<32x128xbf16>
    %11 = tpu.iota {dimensions = array<i32: 1>} : vector<8x128xi32>
    %c64_i32 = arith.constant 64 : i32
    %12 = vector.broadcast %c64_i32 : i32 to vector<8x128xi32>
    %13 = arith.cmpi sge, %11, %12 : vector<8x128xi32>
    %c96_i32 = arith.constant 96 : i32
    %14 = vector.broadcast %c96_i32 : i32 to vector<8x128xi32>
    %15 = arith.cmpi slt, %11, %14 : vector<8x128xi32>
    %16 = arith.andi %13, %15 : vector<8x128xi1>
    %c0_10 = arith.constant 0 : index
    %c0_11 = arith.constant 0 : index
    %c0_12 = arith.constant 0 : index
    %17 = vector.load %arg17[%c0_10, %c0_11, %c0_12] : memref<2x8x32xf32, #tpu.memory_space<vmem>>, vector<1x8x32xf32>
    %18 = vector.shape_cast %17 : vector<1x8x32xf32> to vector<8x32xf32>
    %c0_13 = arith.constant 0 : index
    %c0_14 = arith.constant 0 : index
    %c0_15 = arith.constant 0 : index
    %19 = vector.load %arg18[%c0_13, %c0_14, %c0_15] : memref<2x8x32xf32, #tpu.memory_space<vmem>>, vector<1x8x32xf32>
    %20 = vector.shape_cast %19 : vector<1x8x32xf32> to vector<8x32xf32>
    %c0_i32_16 = arith.constant 0 : i32
    %c8_i32 = arith.constant 8 : i32
    %21 = arith.muli %c0_i32_16, %c8_i32 : i32
    %22 = tpu.assume_multiple %21, 8 : i32
    %23 = arith.index_cast %22 : i32 to index
    %c0_17 = arith.constant 0 : index
    %24 = vector.load %arg16[%23, %c0_17] : memref<32x128xf32, #tpu.memory_space<vmem>>, vector<8x128xf32>
    %25 = arith.truncf %18 : vector<8x32xf32> to vector<8x32xbf16>
    %cst_18 = arith.constant dense<0.000000e+00> : vector<8x128xf32>
    %26 = tpu.matmul %25, %10, %cst_18 {dimension_numbers = #tpu.dot_dimension_numbers<[1], [0], [0], [1], [0, 0, 1, 1], [], []>} : vector<8x32xbf16>, vector<32x128xbf16>, vector<8x128xf32> -> vector<8x128xf32>
    %27 = arith.addf %24, %26 : vector<8x128xf32>
    %cst_19 = arith.constant 5.000000e-01 : f32
    %28 = vector.broadcast %cst_19 : f32 to vector<8x128xf32>
    %29 = arith.mulf %28, %27 : vector<8x128xf32>
    %30 = arith.select %16, %27, %29 : vector<8x128xi1>, vector<8x128xf32>
    %31 = math.tanh %30 : vector<8x128xf32>
    %cst_20 = arith.constant 1.000000e+00 : f32
    %32 = vector.broadcast %cst_20 : f32 to vector<8x128xf32>
    %33 = arith.addf %31, %32 : vector<8x128xf32>
    %cst_21 = arith.constant 5.000000e-01 : f32
    %34 = vector.broadcast %cst_21 : f32 to vector<8x128xf32>
    %35 = arith.mulf %34, %33 : vector<8x128xf32>
    %36 = arith.select %16, %31, %35 : vector<8x128xi1>, vector<8x128xf32>
    %37 = vector.extract_strided_slice %36 {offsets = [0, 0], sizes = [8, 32], strides = [1, 1]} : vector<8x128xf32> to vector<8x32xf32>
    %38 = vector.extract_strided_slice %36 {offsets = [0, 32], sizes = [8, 32], strides = [1, 1]} : vector<8x128xf32> to vector<8x32xf32>
    %39 = vector.extract_strided_slice %36 {offsets = [0, 64], sizes = [8, 32], strides = [1, 1]} : vector<8x128xf32> to vector<8x32xf32>
    %40 = vector.extract_strided_slice %36 {offsets = [0, 96], sizes = [8, 32], strides = [1, 1]} : vector<8x128xf32> to vector<8x32xf32>
    %41 = arith.mulf %38, %20 : vector<8x32xf32>
    %42 = arith.mulf %37, %39 : vector<8x32xf32>
    %43 = arith.addf %41, %42 : vector<8x32xf32>
    %44 = math.tanh %43 : vector<8x32xf32>
    %45 = arith.mulf %40, %44 : vector<8x32xf32>
    %46 = arith.index_cast %22 : i32 to index
    %c0_22 = arith.constant 0 : index
    %47 = vector.load %arg15[%46, %c0_22] : memref<32x32xf32, #tpu.memory_space<vmem>>, vector<8x32xf32>
    tpu.vector_store %arg15[%46, %c0_22], %45 {strides = array<i32>} : memref<32x32xf32, #tpu.memory_space<vmem>>, vector<8x32xf32>,
    %c1_i32 = arith.constant 1 : i32
    %c8_i32_23 = arith.constant 8 : i32
    %48 = arith.muli %c1_i32, %c8_i32_23 : i32
    %49 = tpu.assume_multiple %48, 8 : i32
    %50 = arith.index_cast %49 : i32 to index
    %c0_24 = arith.constant 0 : index
    %51 = vector.load %arg16[%50, %c0_24] : memref<32x128xf32, #tpu.memory_space<vmem>>, vector<8x128xf32>
    %52 = arith.truncf %45 : vector<8x32xf32> to vector<8x32xbf16>
    %cst_25 = arith.constant dense<0.000000e+00> : vector<8x128xf32>
    %53 = tpu.matmul %52, %10, %cst_25 {dimension_numbers = #tpu.dot_dimension_numbers<[1], [0], [0], [1], [0, 0, 1, 1], [], []>} : vector<8x32xbf16>, vector<32x128xbf16>, vector<8x128xf32> -> vector<8x128xf32>
    %54 = arith.addf %51, %53 : vector<8x128xf32>
    %cst_26 = arith.constant 5.000000e-01 : f32
    %55 = vector.broadcast %cst_26 : f32 to vector<8x128xf32>
    %56 = arith.mulf %55, %54 : vector<8x128xf32>
    %57 = arith.select %16, %54, %56 : vector<8x128xi1>, vector<8x128xf32>
    %58 = math.tanh %57 : vector<8x128xf32>
    %cst_27 = arith.constant 1.000000e+00 : f32
    %59 = vector.broadcast %cst_27 : f32 to vector<8x128xf32>
    %60 = arith.addf %58, %59 : vector<8x128xf32>
    %cst_28 = arith.constant 5.000000e-01 : f32
    %61 = vector.broadcast %cst_28 : f32 to vector<8x128xf32>
    %62 = arith.mulf %61, %60 : vector<8x128xf32>
    %63 = arith.select %16, %58, %62 : vector<8x128xi1>, vector<8x128xf32>
    %64 = vector.extract_strided_slice %63 {offsets = [0, 0], sizes = [8, 32], strides = [1, 1]} : vector<8x128xf32> to vector<8x32xf32>
    %65 = vector.extract_strided_slice %63 {offsets = [0, 32], sizes = [8, 32], strides = [1, 1]} : vector<8x128xf32> to vector<8x32xf32>
    %66 = vector.extract_strided_slice %63 {offsets = [0, 64], sizes = [8, 32], strides = [1, 1]} : vector<8x128xf32> to vector<8x32xf32>
    %67 = vector.extract_strided_slice %63 {offsets = [0, 96], sizes = [8, 32], strides = [1, 1]} : vector<8x128xf32> to vector<8x32xf32>
    %68 = arith.mulf %65, %43 : vector<8x32xf32>
    %69 = arith.mulf %64, %66 : vector<8x32xf32>
    %70 = arith.addf %68, %69 : vector<8x32xf32>
    %71 = math.tanh %70 : vector<8x32xf32>
    %72 = arith.mulf %67, %71 : vector<8x32xf32>
    %73 = arith.index_cast %49 : i32 to index
    %c0_29 = arith.constant 0 : index
    %74 = vector.load %arg15[%73, %c0_29] : memref<32x32xf32, #tpu.memory_space<vmem>>, vector<8x32xf32>
    tpu.vector_store %arg15[%73, %c0_29], %72 {strides = array<i32>} : memref<32x32xf32, #tpu.memory_space<vmem>>, vector<8x32xf32>,
    %c2_i32 = arith.constant 2 : i32
    %c8_i32_30 = arith.constant 8 : i32
    %75 = arith.muli %c2_i32, %c8_i32_30 : i32
    %76 = tpu.assume_multiple %75, 8 : i32
    %77 = arith.index_cast %76 : i32 to index
    %c0_31 = arith.constant 0 : index
    %78 = vector.load %arg16[%77, %c0_31] : memref<32x128xf32, #tpu.memory_space<vmem>>, vector<8x128xf32>
    %79 = arith.truncf %72 : vector<8x32xf32> to vector<8x32xbf16>
    %cst_32 = arith.constant dense<0.000000e+00> : vector<8x128xf32>
    %80 = tpu.matmul %79, %10, %cst_32 {dimension_numbers = #tpu.dot_dimension_numbers<[1], [0], [0], [1], [0, 0, 1, 1], [], []>} : vector<8x32xbf16>, vector<32x128xbf16>, vector<8x128xf32> -> vector<8x128xf32>
    %81 = arith.addf %78, %80 : vector<8x128xf32>
    %cst_33 = arith.constant 5.000000e-01 : f32
    %82 = vector.broadcast %cst_33 : f32 to vector<8x128xf32>
    %83 = arith.mulf %82, %81 : vector<8x128xf32>
    %84 = arith.select %16, %81, %83 : vector<8x128xi1>, vector<8x128xf32>
    %85 = math.tanh %84 : vector<8x128xf32>
    %cst_34 = arith.constant 1.000000e+00 : f32
    %86 = vector.broadcast %cst_34 : f32 to vector<8x128xf32>
    %87 = arith.addf %85, %86 : vector<8x128xf32>
    %cst_35 = arith.constant 5.000000e-01 : f32
    %88 = vector.broadcast %cst_35 : f32 to vector<8x128xf32>
    %89 = arith.mulf %88, %87 : vector<8x128xf32>
    %90 = arith.select %16, %85, %89 : vector<8x128xi1>, vector<8x128xf32>
    %91 = vector.extract_strided_slice %90 {offsets = [0, 0], sizes = [8, 32], strides = [1, 1]} : vector<8x128xf32> to vector<8x32xf32>
    %92 = vector.extract_strided_slice %90 {offsets = [0, 32], sizes = [8, 32], strides = [1, 1]} : vector<8x128xf32> to vector<8x32xf32>
    %93 = vector.extract_strided_slice %90 {offsets = [0, 64], sizes = [8, 32], strides = [1, 1]} : vector<8x128xf32> to vector<8x32xf32>
    %94 = vector.extract_strided_slice %90 {offsets = [0, 96], sizes = [8, 32], strides = [1, 1]} : vector<8x128xf32> to vector<8x32xf32>
    %95 = arith.mulf %92, %70 : vector<8x32xf32>
    %96 = arith.mulf %91, %93 : vector<8x32xf32>
    %97 = arith.addf %95, %96 : vector<8x32xf32>
    %98 = math.tanh %97 : vector<8x32xf32>
    %99 = arith.mulf %94, %98 : vector<8x32xf32>
    %100 = arith.index_cast %76 : i32 to index
    %c0_36 = arith.constant 0 : index
    %101 = vector.load %arg15[%100, %c0_36] : memref<32x32xf32, #tpu.memory_space<vmem>>, vector<8x32xf32>
    tpu.vector_store %arg15[%100, %c0_36], %99 {strides = array<i32>} : memref<32x32xf32, #tpu.memory_space<vmem>>, vector<8x32xf32>,
    %c3_i32 = arith.constant 3 : i32
    %c8_i32_37 = arith.constant 8 : i32
    %102 = arith.muli %c3_i32, %c8_i32_37 : i32
    %103 = tpu.assume_multiple %102, 8 : i32
    %104 = arith.index_cast %103 : i32 to index
    %c0_38 = arith.constant 0 : index
    %105 = vector.load %arg16[%104, %c0_38] : memref<32x128xf32, #tpu.memory_space<vmem>>, vector<8x128xf32>
    %106 = arith.truncf %99 : vector<8x32xf32> to vector<8x32xbf16>
    %cst_39 = arith.constant dense<0.000000e+00> : vector<8x128xf32>
    %107 = tpu.matmul %106, %10, %cst_39 {dimension_numbers = #tpu.dot_dimension_numbers<[1], [0], [0], [1], [0, 0, 1, 1], [], []>} : vector<8x32xbf16>, vector<32x128xbf16>, vector<8x128xf32> -> vector<8x128xf32>
    %108 = arith.addf %105, %107 : vector<8x128xf32>
    %cst_40 = arith.constant 5.000000e-01 : f32
    %109 = vector.broadcast %cst_40 : f32 to vector<8x128xf32>
    %110 = arith.mulf %109, %108 : vector<8x128xf32>
    %111 = arith.select %16, %108, %110 : vector<8x128xi1>, vector<8x128xf32>
    %112 = math.tanh %111 : vector<8x128xf32>
    %cst_41 = arith.constant 1.000000e+00 : f32
    %113 = vector.broadcast %cst_41 : f32 to vector<8x128xf32>
    %114 = arith.addf %112, %113 : vector<8x128xf32>
    %cst_42 = arith.constant 5.000000e-01 : f32
    %115 = vector.broadcast %cst_42 : f32 to vector<8x128xf32>
    %116 = arith.mulf %115, %114 : vector<8x128xf32>
    %117 = arith.select %16, %112, %116 : vector<8x128xi1>, vector<8x128xf32>
    %118 = vector.extract_strided_slice %117 {offsets = [0, 0], sizes = [8, 32], strides = [1, 1]} : vector<8x128xf32> to vector<8x32xf32>
    %119 = vector.extract_strided_slice %117 {offsets = [0, 32], sizes = [8, 32], strides = [1, 1]} : vector<8x128xf32> to vector<8x32xf32>
    %120 = vector.extract_strided_slice %117 {offsets = [0, 64], sizes = [8, 32], strides = [1, 1]} : vector<8x128xf32> to vector<8x32xf32>
    %121 = vector.extract_strided_slice %117 {offsets = [0, 96], sizes = [8, 32], strides = [1, 1]} : vector<8x128xf32> to vector<8x32xf32>
    %122 = arith.mulf %119, %97 : vector<8x32xf32>
    %123 = arith.mulf %118, %120 : vector<8x32xf32>
    %124 = arith.addf %122, %123 : vector<8x32xf32>
    %125 = math.tanh %124 : vector<8x32xf32>
    %126 = arith.mulf %121, %125 : vector<8x32xf32>
    %127 = arith.index_cast %103 : i32 to index
    %c0_43 = arith.constant 0 : index
    %128 = vector.load %arg15[%127, %c0_43] : memref<32x32xf32, #tpu.memory_space<vmem>>, vector<8x32xf32>
    tpu.vector_store %arg15[%127, %c0_43], %126 {strides = array<i32>} : memref<32x32xf32, #tpu.memory_space<vmem>>, vector<8x32xf32>,
    %c4_i32 = arith.constant 4 : i32
    %c0_44 = arith.constant 0 : index
    %c0_45 = arith.constant 0 : index
    %c0_46 = arith.constant 0 : index
    %129 = vector.load %arg17[%c0_44, %c0_45, %c0_46] : memref<2x8x32xf32, #tpu.memory_space<vmem>>, vector<1x8x32xf32>
    %130 = vector.shape_cast %129 : vector<1x8x32xf32> to vector<8x32xf32>
    %131 = vector.shape_cast %126 : vector<8x32xf32> to vector<1x8x32xf32>
    tpu.vector_store %arg17[%c0_44, %c0_45, %c0_46], %131 {strides = array<i32>} : memref<2x8x32xf32, #tpu.memory_space<vmem>>, vector<1x8x32xf32>,
    %c0_47 = arith.constant 0 : index
    %c0_48 = arith.constant 0 : index
    %c0_49 = arith.constant 0 : index
    %132 = vector.load %arg18[%c0_47, %c0_48, %c0_49] : memref<2x8x32xf32, #tpu.memory_space<vmem>>, vector<1x8x32xf32>
    %133 = vector.shape_cast %132 : vector<1x8x32xf32> to vector<8x32xf32>
    %134 = vector.shape_cast %124 : vector<8x32xf32> to vector<1x8x32xf32>
    tpu.vector_store %arg18[%c0_47, %c0_48, %c0_49], %134 {strides = array<i32>} : memref<2x8x32xf32, #tpu.memory_space<vmem>>, vector<1x8x32xf32>,
    %c0_50 = arith.constant 0 : index
    %c0_51 = arith.constant 0 : index
    %135 = vector.load %arg15[%c0_50, %c0_51] : memref<32x32xf32, #tpu.memory_space<vmem>>, vector<32x32xf32>
    %136 = arith.truncf %135 : vector<32x32xf32> to vector<32x32xbf16>
    %c0_52 = arith.constant 0 : index
    %c0_53 = arith.constant 0 : index
    %137 = vector.load %arg5[%c0_52, %c0_53] : memref<32x128xbf16, #tpu.memory_space<vmem>>, vector<32x128xbf16>
    %cst_54 = arith.constant dense<0.000000e+00> : vector<32x128xf32>
    %138 = tpu.matmul %136, %137, %cst_54 {dimension_numbers = #tpu.dot_dimension_numbers<[1], [0], [0], [1], [0, 0, 1, 1], [], []>} : vector<32x32xbf16>, vector<32x128xbf16>, vector<32x128xf32> -> vector<32x128xf32>
    %c0_55 = arith.constant 0 : index
    %c0_56 = arith.constant 0 : index
    %139 = vector.load %arg7[%c0_55, %c0_56] : memref<1x128xf32, #tpu.memory_space<vmem>>, vector<1x128xf32>
    %140 = vector.broadcast %139 : vector<1x128xf32> to vector<32x128xf32>
    %141 = arith.addf %138, %140 : vector<32x128xf32>
    %c0_57 = arith.constant 0 : index
    %c0_58 = arith.constant 0 : index
    %142 = vector.load %arg16[%c0_57, %c0_58] : memref<32x128xf32, #tpu.memory_space<vmem>>, vector<32x128xf32>
    tpu.vector_store %arg16[%c0_57, %c0_58], %141 {strides = array<i32>} : memref<32x128xf32, #tpu.memory_space<vmem>>, vector<32x128xf32>,
    %c0_59 = arith.constant 0 : index
    %c0_60 = arith.constant 0 : index
    %143 = vector.load %arg6[%c0_59, %c0_60] : memref<32x128xbf16, #tpu.memory_space<vmem>>, vector<32x128xbf16>
    %144 = tpu.iota {dimensions = array<i32: 1>} : vector<8x128xi32>
    %c64_i32_61 = arith.constant 64 : i32
    %145 = vector.broadcast %c64_i32_61 : i32 to vector<8x128xi32>
    %146 = arith.cmpi sge, %144, %145 : vector<8x128xi32>
    %c96_i32_62 = arith.constant 96 : i32
    %147 = vector.broadcast %c96_i32_62 : i32 to vector<8x128xi32>
    %148 = arith.cmpi slt, %144, %147 : vector<8x128xi32>
    %149 = arith.andi %146, %148 : vector<8x128xi1>
    %c1 = arith.constant 1 : index
    %c0_63 = arith.constant 0 : index
    %c0_64 = arith.constant 0 : index
    %150 = vector.load %arg17[%c1, %c0_63, %c0_64] : memref<2x8x32xf32, #tpu.memory_space<vmem>>, vector<1x8x32xf32>
    %151 = vector.shape_cast %150 : vector<1x8x32xf32> to vector<8x32xf32>
    %c1_65 = arith.constant 1 : index
    %c0_66 = arith.constant 0 : index
    %c0_67 = arith.constant 0 : index
    %152 = vector.load %arg18[%c1_65, %c0_66, %c0_67] : memref<2x8x32xf32, #tpu.memory_space<vmem>>, vector<1x8x32xf32>
    %153 = vector.shape_cast %152 : vector<1x8x32xf32> to vector<8x32xf32>
    %c0_i32_68 = arith.constant 0 : i32
    %c8_i32_69 = arith.constant 8 : i32
    %154 = arith.muli %c0_i32_68, %c8_i32_69 : i32
    %155 = tpu.assume_multiple %154, 8 : i32
    %156 = arith.index_cast %155 : i32 to index
    %c0_70 = arith.constant 0 : index
    %157 = vector.load %arg16[%156, %c0_70] : memref<32x128xf32, #tpu.memory_space<vmem>>, vector<8x128xf32>
    %158 = arith.truncf %151 : vector<8x32xf32> to vector<8x32xbf16>
    %cst_71 = arith.constant dense<0.000000e+00> : vector<8x128xf32>
    %159 = tpu.matmul %158, %143, %cst_71 {dimension_numbers = #tpu.dot_dimension_numbers<[1], [0], [0], [1], [0, 0, 1, 1], [], []>} : vector<8x32xbf16>, vector<32x128xbf16>, vector<8x128xf32> -> vector<8x128xf32>
    %160 = arith.addf %157, %159 : vector<8x128xf32>
    %cst_72 = arith.constant 5.000000e-01 : f32
    %161 = vector.broadcast %cst_72 : f32 to vector<8x128xf32>
    %162 = arith.mulf %161, %160 : vector<8x128xf32>
    %163 = arith.select %149, %160, %162 : vector<8x128xi1>, vector<8x128xf32>
    %164 = math.tanh %163 : vector<8x128xf32>
    %cst_73 = arith.constant 1.000000e+00 : f32
    %165 = vector.broadcast %cst_73 : f32 to vector<8x128xf32>
    %166 = arith.addf %164, %165 : vector<8x128xf32>
    %cst_74 = arith.constant 5.000000e-01 : f32
    %167 = vector.broadcast %cst_74 : f32 to vector<8x128xf32>
    %168 = arith.mulf %167, %166 : vector<8x128xf32>
    %169 = arith.select %149, %164, %168 : vector<8x128xi1>, vector<8x128xf32>
    %170 = vector.extract_strided_slice %169 {offsets = [0, 0], sizes = [8, 32], strides = [1, 1]} : vector<8x128xf32> to vector<8x32xf32>
    %171 = vector.extract_strided_slice %169 {offsets = [0, 32], sizes = [8, 32], strides = [1, 1]} : vector<8x128xf32> to vector<8x32xf32>
    %172 = vector.extract_strided_slice %169 {offsets = [0, 64], sizes = [8, 32], strides = [1, 1]} : vector<8x128xf32> to vector<8x32xf32>
    %173 = vector.extract_strided_slice %169 {offsets = [0, 96], sizes = [8, 32], strides = [1, 1]} : vector<8x128xf32> to vector<8x32xf32>
    %174 = arith.mulf %171, %153 : vector<8x32xf32>
    %175 = arith.mulf %170, %172 : vector<8x32xf32>
    %176 = arith.addf %174, %175 : vector<8x32xf32>
    %177 = math.tanh %176 : vector<8x32xf32>
    %178 = arith.mulf %173, %177 : vector<8x32xf32>
    %179 = arith.index_cast %155 : i32 to index
    %c0_75 = arith.constant 0 : index
    %180 = vector.load %arg15[%179, %c0_75] : memref<32x32xf32, #tpu.memory_space<vmem>>, vector<8x32xf32>
    tpu.vector_store %arg15[%179, %c0_75], %178 {strides = array<i32>} : memref<32x32xf32, #tpu.memory_space<vmem>>, vector<8x32xf32>,
    %c1_i32_76 = arith.constant 1 : i32
    %c8_i32_77 = arith.constant 8 : i32
    %181 = arith.muli %c1_i32_76, %c8_i32_77 : i32
    %182 = tpu.assume_multiple %181, 8 : i32
    %183 = arith.index_cast %182 : i32 to index
    %c0_78 = arith.constant 0 : index
    %184 = vector.load %arg16[%183, %c0_78] : memref<32x128xf32, #tpu.memory_space<vmem>>, vector<8x128xf32>
    %185 = arith.truncf %178 : vector<8x32xf32> to vector<8x32xbf16>
    %cst_79 = arith.constant dense<0.000000e+00> : vector<8x128xf32>
    %186 = tpu.matmul %185, %143, %cst_79 {dimension_numbers = #tpu.dot_dimension_numbers<[1], [0], [0], [1], [0, 0, 1, 1], [], []>} : vector<8x32xbf16>, vector<32x128xbf16>, vector<8x128xf32> -> vector<8x128xf32>
    %187 = arith.addf %184, %186 : vector<8x128xf32>
    %cst_80 = arith.constant 5.000000e-01 : f32
    %188 = vector.broadcast %cst_80 : f32 to vector<8x128xf32>
    %189 = arith.mulf %188, %187 : vector<8x128xf32>
    %190 = arith.select %149, %187, %189 : vector<8x128xi1>, vector<8x128xf32>
    %191 = math.tanh %190 : vector<8x128xf32>
    %cst_81 = arith.constant 1.000000e+00 : f32
    %192 = vector.broadcast %cst_81 : f32 to vector<8x128xf32>
    %193 = arith.addf %191, %192 : vector<8x128xf32>
    %cst_82 = arith.constant 5.000000e-01 : f32
    %194 = vector.broadcast %cst_82 : f32 to vector<8x128xf32>
    %195 = arith.mulf %194, %193 : vector<8x128xf32>
    %196 = arith.select %149, %191, %195 : vector<8x128xi1>, vector<8x128xf32>
    %197 = vector.extract_strided_slice %196 {offsets = [0, 0], sizes = [8, 32], strides = [1, 1]} : vector<8x128xf32> to vector<8x32xf32>
    %198 = vector.extract_strided_slice %196 {offsets = [0, 32], sizes = [8, 32], strides = [1, 1]} : vector<8x128xf32> to vector<8x32xf32>
    %199 = vector.extract_strided_slice %196 {offsets = [0, 64], sizes = [8, 32], strides = [1, 1]} : vector<8x128xf32> to vector<8x32xf32>
    %200 = vector.extract_strided_slice %196 {offsets = [0, 96], sizes = [8, 32], strides = [1, 1]} : vector<8x128xf32> to vector<8x32xf32>
    %201 = arith.mulf %198, %176 : vector<8x32xf32>
    %202 = arith.mulf %197, %199 : vector<8x32xf32>
    %203 = arith.addf %201, %202 : vector<8x32xf32>
    %204 = math.tanh %203 : vector<8x32xf32>
    %205 = arith.mulf %200, %204 : vector<8x32xf32>
    %206 = arith.index_cast %182 : i32 to index
    %c0_83 = arith.constant 0 : index
    %207 = vector.load %arg15[%206, %c0_83] : memref<32x32xf32, #tpu.memory_space<vmem>>, vector<8x32xf32>
    tpu.vector_store %arg15[%206, %c0_83], %205 {strides = array<i32>} : memref<32x32xf32, #tpu.memory_space<vmem>>, vector<8x32xf32>,
    %c2_i32_84 = arith.constant 2 : i32
    %c8_i32_85 = arith.constant 8 : i32
    %208 = arith.muli %c2_i32_84, %c8_i32_85 : i32
    %209 = tpu.assume_multiple %208, 8 : i32
    %210 = arith.index_cast %209 : i32 to index
    %c0_86 = arith.constant 0 : index
    %211 = vector.load %arg16[%210, %c0_86] : memref<32x128xf32, #tpu.memory_space<vmem>>, vector<8x128xf32>
    %212 = arith.truncf %205 : vector<8x32xf32> to vector<8x32xbf16>
    %cst_87 = arith.constant dense<0.000000e+00> : vector<8x128xf32>
    %213 = tpu.matmul %212, %143, %cst_87 {dimension_numbers = #tpu.dot_dimension_numbers<[1], [0], [0], [1], [0, 0, 1, 1], [], []>} : vector<8x32xbf16>, vector<32x128xbf16>, vector<8x128xf32> -> vector<8x128xf32>
    %214 = arith.addf %211, %213 : vector<8x128xf32>
    %cst_88 = arith.constant 5.000000e-01 : f32
    %215 = vector.broadcast %cst_88 : f32 to vector<8x128xf32>
    %216 = arith.mulf %215, %214 : vector<8x128xf32>
    %217 = arith.select %149, %214, %216 : vector<8x128xi1>, vector<8x128xf32>
    %218 = math.tanh %217 : vector<8x128xf32>
    %cst_89 = arith.constant 1.000000e+00 : f32
    %219 = vector.broadcast %cst_89 : f32 to vector<8x128xf32>
    %220 = arith.addf %218, %219 : vector<8x128xf32>
    %cst_90 = arith.constant 5.000000e-01 : f32
    %221 = vector.broadcast %cst_90 : f32 to vector<8x128xf32>
    %222 = arith.mulf %221, %220 : vector<8x128xf32>
    %223 = arith.select %149, %218, %222 : vector<8x128xi1>, vector<8x128xf32>
    %224 = vector.extract_strided_slice %223 {offsets = [0, 0], sizes = [8, 32], strides = [1, 1]} : vector<8x128xf32> to vector<8x32xf32>
    %225 = vector.extract_strided_slice %223 {offsets = [0, 32], sizes = [8, 32], strides = [1, 1]} : vector<8x128xf32> to vector<8x32xf32>
    %226 = vector.extract_strided_slice %223 {offsets = [0, 64], sizes = [8, 32], strides = [1, 1]} : vector<8x128xf32> to vector<8x32xf32>
    %227 = vector.extract_strided_slice %223 {offsets = [0, 96], sizes = [8, 32], strides = [1, 1]} : vector<8x128xf32> to vector<8x32xf32>
    %228 = arith.mulf %225, %203 : vector<8x32xf32>
    %229 = arith.mulf %224, %226 : vector<8x32xf32>
    %230 = arith.addf %228, %229 : vector<8x32xf32>
    %231 = math.tanh %230 : vector<8x32xf32>
    %232 = arith.mulf %227, %231 : vector<8x32xf32>
    %233 = arith.index_cast %209 : i32 to index
    %c0_91 = arith.constant 0 : index
    %234 = vector.load %arg15[%233, %c0_91] : memref<32x32xf32, #tpu.memory_space<vmem>>, vector<8x32xf32>
    tpu.vector_store %arg15[%233, %c0_91], %232 {strides = array<i32>} : memref<32x32xf32, #tpu.memory_space<vmem>>, vector<8x32xf32>,
    %c3_i32_92 = arith.constant 3 : i32
    %c8_i32_93 = arith.constant 8 : i32
    %235 = arith.muli %c3_i32_92, %c8_i32_93 : i32
    %236 = tpu.assume_multiple %235, 8 : i32
    %237 = arith.index_cast %236 : i32 to index
    %c0_94 = arith.constant 0 : index
    %238 = vector.load %arg16[%237, %c0_94] : memref<32x128xf32, #tpu.memory_space<vmem>>, vector<8x128xf32>
    %239 = arith.truncf %232 : vector<8x32xf32> to vector<8x32xbf16>
    %cst_95 = arith.constant dense<0.000000e+00> : vector<8x128xf32>
    %240 = tpu.matmul %239, %143, %cst_95 {dimension_numbers = #tpu.dot_dimension_numbers<[1], [0], [0], [1], [0, 0, 1, 1], [], []>} : vector<8x32xbf16>, vector<32x128xbf16>, vector<8x128xf32> -> vector<8x128xf32>
    %241 = arith.addf %238, %240 : vector<8x128xf32>
    %cst_96 = arith.constant 5.000000e-01 : f32
    %242 = vector.broadcast %cst_96 : f32 to vector<8x128xf32>
    %243 = arith.mulf %242, %241 : vector<8x128xf32>
    %244 = arith.select %149, %241, %243 : vector<8x128xi1>, vector<8x128xf32>
    %245 = math.tanh %244 : vector<8x128xf32>
    %cst_97 = arith.constant 1.000000e+00 : f32
    %246 = vector.broadcast %cst_97 : f32 to vector<8x128xf32>
    %247 = arith.addf %245, %246 : vector<8x128xf32>
    %cst_98 = arith.constant 5.000000e-01 : f32
    %248 = vector.broadcast %cst_98 : f32 to vector<8x128xf32>
    %249 = arith.mulf %248, %247 : vector<8x128xf32>
    %250 = arith.select %149, %245, %249 : vector<8x128xi1>, vector<8x128xf32>
    %251 = vector.extract_strided_slice %250 {offsets = [0, 0], sizes = [8, 32], strides = [1, 1]} : vector<8x128xf32> to vector<8x32xf32>
    %252 = vector.extract_strided_slice %250 {offsets = [0, 32], sizes = [8, 32], strides = [1, 1]} : vector<8x128xf32> to vector<8x32xf32>
    %253 = vector.extract_strided_slice %250 {offsets = [0, 64], sizes = [8, 32], strides = [1, 1]} : vector<8x128xf32> to vector<8x32xf32>
    %254 = vector.extract_strided_slice %250 {offsets = [0, 96], sizes = [8, 32], strides = [1, 1]} : vector<8x128xf32> to vector<8x32xf32>
    %255 = arith.mulf %252, %230 : vector<8x32xf32>
    %256 = arith.mulf %251, %253 : vector<8x32xf32>
    %257 = arith.addf %255, %256 : vector<8x32xf32>
    %258 = math.tanh %257 : vector<8x32xf32>
    %259 = arith.mulf %254, %258 : vector<8x32xf32>
    %260 = arith.index_cast %236 : i32 to index
    %c0_99 = arith.constant 0 : index
    %261 = vector.load %arg15[%260, %c0_99] : memref<32x32xf32, #tpu.memory_space<vmem>>, vector<8x32xf32>
    tpu.vector_store %arg15[%260, %c0_99], %259 {strides = array<i32>} : memref<32x32xf32, #tpu.memory_space<vmem>>, vector<8x32xf32>,
    %c4_i32_100 = arith.constant 4 : i32
    %c1_101 = arith.constant 1 : index
    %c0_102 = arith.constant 0 : index
    %c0_103 = arith.constant 0 : index
    %262 = vector.load %arg17[%c1_101, %c0_102, %c0_103] : memref<2x8x32xf32, #tpu.memory_space<vmem>>, vector<1x8x32xf32>
    %263 = vector.shape_cast %262 : vector<1x8x32xf32> to vector<8x32xf32>
    %264 = vector.shape_cast %259 : vector<8x32xf32> to vector<1x8x32xf32>
    tpu.vector_store %arg17[%c1_101, %c0_102, %c0_103], %264 {strides = array<i32>} : memref<2x8x32xf32, #tpu.memory_space<vmem>>, vector<1x8x32xf32>,
    %c1_104 = arith.constant 1 : index
    %c0_105 = arith.constant 0 : index
    %c0_106 = arith.constant 0 : index
    %265 = vector.load %arg18[%c1_104, %c0_105, %c0_106] : memref<2x8x32xf32, #tpu.memory_space<vmem>>, vector<1x8x32xf32>
    %266 = vector.shape_cast %265 : vector<1x8x32xf32> to vector<8x32xf32>
    %267 = vector.shape_cast %257 : vector<8x32xf32> to vector<1x8x32xf32>
    tpu.vector_store %arg18[%c1_104, %c0_105, %c0_106], %267 {strides = array<i32>} : memref<2x8x32xf32, #tpu.memory_space<vmem>>, vector<1x8x32xf32>,
    %c0_107 = arith.constant 0 : index
    %c0_108 = arith.constant 0 : index
    %268 = vector.load %arg15[%c0_107, %c0_108] : memref<32x32xf32, #tpu.memory_space<vmem>>, vector<32x32xf32>
    %269 = arith.truncf %268 : vector<32x32xf32> to vector<32x32xbf16>
    %c0_109 = arith.constant 0 : index
    %c0_110 = arith.constant 0 : index
    %270 = vector.load %arg8[%c0_109, %c0_110] : memref<32x32xbf16, #tpu.memory_space<vmem>>, vector<32x32xbf16>
    %cst_111 = arith.constant dense<0.000000e+00> : vector<32x32xf32>
    %271 = tpu.matmul %269, %270, %cst_111 {dimension_numbers = #tpu.dot_dimension_numbers<[1], [0], [0], [1], [0, 0, 1, 1], [], []>} : vector<32x32xbf16>, vector<32x32xbf16>, vector<32x32xf32> -> vector<32x32xf32>
    %c0_112 = arith.constant 0 : index
    %c0_113 = arith.constant 0 : index
    %272 = vector.load %arg9[%c0_112, %c0_113] : memref<1x32xf32, #tpu.memory_space<vmem>>, vector<1x32xf32>
    %273 = vector.broadcast %272 : vector<1x32xf32> to vector<32x32xf32>
    %274 = arith.addf %271, %273 : vector<32x32xf32>
    %cst_114 = arith.constant 0.000000e+00 : f32
    %275 = vector.broadcast %cst_114 : f32 to vector<32x32xf32>
    %276 = arith.maximumf %274, %275 : vector<32x32xf32>
    %277 = arith.truncf %276 : vector<32x32xf32> to vector<32x32xbf16>
    %c0_115 = arith.constant 0 : index
    %c0_116 = arith.constant 0 : index
    %278 = vector.load %arg10[%c0_115, %c0_116] : memref<32x32xbf16, #tpu.memory_space<vmem>>, vector<32x32xbf16>
    %cst_117 = arith.constant dense<0.000000e+00> : vector<32x32xf32>
    %279 = tpu.matmul %277, %278, %cst_117 {dimension_numbers = #tpu.dot_dimension_numbers<[1], [0], [0], [1], [0, 0, 1, 1], [], []>} : vector<32x32xbf16>, vector<32x32xbf16>, vector<32x32xf32> -> vector<32x32xf32>
    %c0_118 = arith.constant 0 : index
    %c0_119 = arith.constant 0 : index
    %280 = vector.load %arg11[%c0_118, %c0_119] : memref<1x32xf32, #tpu.memory_space<vmem>>, vector<1x32xf32>
    %281 = vector.broadcast %280 : vector<1x32xf32> to vector<32x32xf32>
    %282 = arith.addf %279, %281 : vector<32x32xf32>
    %cst_120 = arith.constant 0.000000e+00 : f32
    %283 = vector.broadcast %cst_120 : f32 to vector<32x32xf32>
    %284 = arith.maximumf %282, %283 : vector<32x32xf32>
    %285 = arith.truncf %284 : vector<32x32xf32> to vector<32x32xbf16>
    %c0_121 = arith.constant 0 : index
    %c0_122 = arith.constant 0 : index
    %286 = vector.load %arg12[%c0_121, %c0_122] : memref<32x128xbf16, #tpu.memory_space<vmem>>, vector<32x128xbf16>
    %cst_123 = arith.constant dense<0.000000e+00> : vector<32x128xf32>
    %287 = tpu.matmul %285, %286, %cst_123 {dimension_numbers = #tpu.dot_dimension_numbers<[1], [0], [0], [1], [0, 0, 1, 1], [], []>} : vector<32x32xbf16>, vector<32x128xbf16>, vector<32x128xf32> -> vector<32x128xf32>
    %c0_124 = arith.constant 0 : index
    %c0_125 = arith.constant 0 : index
    %288 = vector.load %arg13[%c0_124, %c0_125] : memref<1x128xf32, #tpu.memory_space<vmem>>, vector<1x128xf32>
    %289 = vector.broadcast %288 : vector<1x128xf32> to vector<32x128xf32>
    %290 = arith.addf %287, %289 : vector<32x128xf32>
    %c0_126 = arith.constant 0 : index
    %c0_127 = arith.constant 0 : index
    %291 = vector.load %arg14[%c0_126, %c0_127] : memref<32x128xf32, #tpu.memory_space<vmem>>, vector<32x128xf32>
    tpu.vector_store %arg14[%c0_126, %c0_127], %290 {strides = array<i32>} : memref<32x128xf32, #tpu.memory_space<vmem>>, vector<32x128xf32>,
    return
  }
  func.func @transform_0(%arg0: i32) -> (i32, i32) {
    %c0_i32 = arith.constant 0 : i32
    %c0_i32_0 = arith.constant 0 : i32
    return %arg0, %c0_i32 : i32, i32
  }
  func.func @transform_1(%arg0: i32) -> (i32, i32) {
    %c0_i32 = arith.constant 0 : i32
    %c0_i32_0 = arith.constant 0 : i32
    %c0_i32_1 = arith.constant 0 : i32
    return %c0_i32, %c0_i32_0 : i32, i32
  }
  func.func @transform_2(%arg0: i32) -> (i32, i32) {
    %c0_i32 = arith.constant 0 : i32
    %c0_i32_0 = arith.constant 0 : i32
    %c0_i32_1 = arith.constant 0 : i32
    return %c0_i32, %c0_i32_0 : i32, i32
  }
  func.func @transform_3(%arg0: i32) -> (i32, i32) {
    %c0_i32 = arith.constant 0 : i32
    %c0_i32_0 = arith.constant 0 : i32
    %c0_i32_1 = arith.constant 0 : i32
    return %c0_i32, %c0_i32_0 : i32, i32
  }
  func.func @transform_4(%arg0: i32) -> (i32, i32) {
    %c0_i32 = arith.constant 0 : i32
    %c0_i32_0 = arith.constant 0 : i32
    %c0_i32_1 = arith.constant 0 : i32
    return %c0_i32, %c0_i32_0 : i32, i32
  }
  func.func @transform_5(%arg0: i32) -> (i32, i32) {
    %c0_i32 = arith.constant 0 : i32
    %c0_i32_0 = arith.constant 0 : i32
    %c0_i32_1 = arith.constant 0 : i32
    return %c0_i32, %c0_i32_0 : i32, i32
  }
  func.func @transform_6(%arg0: i32) -> (i32, i32) {
    %c0_i32 = arith.constant 0 : i32
    %c0_i32_0 = arith.constant 0 : i32
    %c0_i32_1 = arith.constant 0 : i32
    return %c0_i32, %c0_i32_0 : i32, i32
  }
  func.func @transform_7(%arg0: i32) -> (i32, i32) {
    %c0_i32 = arith.constant 0 : i32
    %c0_i32_0 = arith.constant 0 : i32
    %c0_i32_1 = arith.constant 0 : i32
    return %c0_i32, %c0_i32_0 : i32, i32
  }
  func.func @transform_8(%arg0: i32) -> (i32, i32) {
    %c0_i32 = arith.constant 0 : i32
    %c0_i32_0 = arith.constant 0 : i32
    %c0_i32_1 = arith.constant 0 : i32
    return %c0_i32, %c0_i32_0 : i32, i32
  }
  func.func @transform_9(%arg0: i32) -> (i32, i32) {
    %c0_i32 = arith.constant 0 : i32
    %c0_i32_0 = arith.constant 0 : i32
    %c0_i32_1 = arith.constant 0 : i32
    return %c0_i32, %c0_i32_0 : i32, i32
  }
  func.func @transform_10(%arg0: i32) -> (i32, i32) {
    %c0_i32 = arith.constant 0 : i32
    %c0_i32_0 = arith.constant 0 : i32
    %c0_i32_1 = arith.constant 0 : i32
    return %c0_i32, %c0_i32_0 : i32, i32
  }
  func.func @transform_11(%arg0: i32) -> (i32, i32) {
    %c0_i32 = arith.constant 0 : i32
    %c0_i32_0 = arith.constant 0 : i32
    %c0_i32_1 = arith.constant 0 : i32
    return %c0_i32, %c0_i32_0 : i32, i32
  }
  func.func @transform_12(%arg0: i32) -> (i32, i32) {
    %c0_i32 = arith.constant 0 : i32
    %c0_i32_0 = arith.constant 0 : i32
    %c0_i32_1 = arith.constant 0 : i32
    return %c0_i32, %c0_i32_0 : i32, i32
  }
  func.func @transform_13(%arg0: i32) -> (i32, i32) {
    %c0_i32 = arith.constant 0 : i32
    %c0_i32_0 = arith.constant 0 : i32
    return %arg0, %c0_i32 : i32, i32
  }
}

</mosaic_0001>

<llo_original>
// kernel: itw_lstm_forward.1
$region0: #{itw_lstm_forward.1}
  #allocation0 [shape = 'u32[]', space=smem, size = 0x4, offset = 0x4, fixed_abs, tag = 'smem constant byte address 0x4 - core index']
  #allocation1 [shape = 'u32[72,128]{1,0:T(1,128)}', space=vmem, size = 0x9000, scoped, tag = 'internal scratch']
  #allocation2 [shape = 'f32[32,32]{1,0:T(8,128)}', space=vmem, size = 0x4000, scoped, tag = 'scratch operand']
  #allocation3 [shape = 'f32[32,128]{1,0:T(8,128)}', space=vmem, size = 0x4000, scoped, tag = 'scratch operand']
  #allocation4 [shape = 'f32[2,8,32]{2,1,0:T(8,128)}', space=vmem, size = 0x2000, scoped, tag = 'scratch operand']
  #allocation5 [shape = 'f32[2,8,32]{2,1,0:T(8,128)}', space=vmem, size = 0x2000, scoped, tag = 'scratch operand']
  %s0 = inlined_call_operand.vmem [shape: bf16[64,128], index: 0, kind: input, shape index: {}]
  %s1 = inlined_call_operand.vmem [shape: bf16[128,128], index: 1, kind: input, shape index: {}]
  %s2 = inlined_call_operand.vmem [shape: bf16[32,128], index: 2, kind: input, shape index: {}]
  %s3 = inlined_call_operand.vmem [shape: f32[1,128], index: 3, kind: input, shape index: {}]
  %s4 = inlined_call_operand.hbm [shape: bf16[32,128], index: 4, kind: input, shape index: {}]
  %s5 = inlined_call_operand.hbm [shape: bf16[32,128], index: 5, kind: input, shape index: {}]
  %s6 = inlined_call_operand.vmem [shape: f32[1,128], index: 6, kind: input, shape index: {}]
  %s7 = inlined_call_operand.hbm [shape: bf16[32,32], index: 7, kind: input, shape index: {}]
  %s8 = inlined_call_operand.vmem [shape: f32[1,32], index: 8, kind: input, shape index: {}]
  %s9 = inlined_call_operand.hbm [shape: bf16[32,32], index: 9, kind: input, shape index: {}]
  %s10 = inlined_call_operand.vmem [shape: f32[1,32], index: 10, kind: input, shape index: {}]
  %s11 = inlined_call_operand.hbm [shape: bf16[32,128], index: 11, kind: input, shape index: {}]
  %s12 = inlined_call_operand.vmem [shape: f32[1,128], index: 12, kind: input, shape index: {}]
  %s13 = inlined_call_operand.vmem [shape: f32[64,128], index: 13, kind: output, shape index: {}]
  %s14 = sld [smem:[#allocation0]]
  $region109: #{itw_lstm_forward.1} parent=0
    _
  %s16 = ssub.s32 1, %s14
  %s17 = scalar_select 0, %s16, %s14
  $region1: #{itw_lstm_forward.1} parent=0
    #allocation6 [shape = 'u8[8192]{0}', space=vmem, size = 0x2000, scoped, tag = 'input window, operand 4, single buffered']
    #allocation7 [shape = 's32[2]{0}', space=sflag, size = 0x8, scoped, tag = 'scoped memory for itw_lstm_forward.1']
    #allocation8 [shape = 'u8[8192]{0}', space=vmem, size = 0x2000, scoped, tag = 'input window, operand 5, single buffered']
    #allocation9 [shape = 's32[1]{0}', space=sflag, size = 0x4, scoped, tag = 'scoped memory for itw_lstm_forward.1']
    #allocation10 [shape = 'u8[8192]{0}', space=vmem, size = 0x2000, scoped, tag = 'input window, operand 7, single buffered']
    #allocation11 [shape = 'u8[8192]{0}', space=vmem, size = 0x2000, scoped, tag = 'input window, operand 9, single buffered']
    #allocation12 [shape = 's32[1]{0}', space=sflag, size = 0x4, scoped, tag = 'scoped memory for itw_lstm_forward.1']
    #allocation13 [shape = 'u8[8192]{0}', space=vmem, size = 0x2000, scoped, tag = 'input window, operand 11, single buffered']
    %18 = vsyncpa [#allocation7], 0
    %19 = vsyncpa [#allocation9], 0
    %20 = vsyncpa [#allocation12], 0
    loop: start=0, step=1, limit=4
    $region2: #{itw_lstm_forward.1} parent=1 // loop_pre_header
      _
    $region3: #{itw_lstm_forward.1} parent=1 // loop_header
      %s22 = sphi 0, %s26
      %p23 = scmp.ge.s32.totalorder %s22, 4
      %s32 = sphi 0, %s34
      %s35 = sphi 0, %s32
      %s36 = sphi 0, %s35
      %s52 = sphi 0, %s36
      %s56 = sphi 0, %s56
      %s58 = sphi 0, %s56
      %s59 = sphi 0, %s58
      %s73 = sphi 0, %s59
      %s77 = sphi 0, %s77
      %s79 = sphi 0, %s77
      %s80 = sphi 0, %s79
      %s94 = sphi 0, %s80
      %s98 = sphi 0, %s98
      %s100 = sphi 0, %s98
      %s101 = sphi 0, %s100
      %s115 = sphi 0, %s101
      %s119 = sphi 0, %s119
      %s121 = sphi 0, %s119
      %s122 = sphi 0, %s121
      %s136 = sphi 0, %s122
      %s140 = sphi 0, %s140
      %s142 = sphi 0, %s140
      %s143 = sphi 0, %s142
      %s157 = sphi 0, %s143
      %s161 = sphi 0, %s161
      %s163 = sphi 0, %s161
      %s164 = sphi 0, %s163
      %s178 = sphi 0, %s164
      %s182 = sphi 0, %s182
      %s184 = sphi 0, %s182
      %s185 = sphi 0, %s184
      %s199 = sphi 0, %s185
      %s203 = sphi 0, %s203
      %s205 = sphi 0, %s203
      %s206 = sphi 0, %s205
      %s220 = sphi 0, %s206
      %s224 = sphi 0, %s224
      %s226 = sphi 0, %s224
      %s227 = sphi 0, %s226
      %s241 = sphi 0, %s227
      %s245 = sphi 0, %s245
      %s247 = sphi 0, %s245
      %s248 = sphi 0, %s247
      %s262 = sphi 0, %s248
      %s266 = sphi 0, %s266
      %s268 = sphi 0, %s266
      %s269 = sphi 0, %s268
      %s283 = sphi 0, %s269
      %s287 = sphi 0, %s287
      %s289 = sphi 0, %s287
      %s290 = sphi 0, %s289
      %s304 = sphi 0, %s290
      %s310 = sphi 0, %s312
      %s313 = sphi 0, %s310
      %s314 = sphi 0, %s313
      %s330 = sphi 0, %s314
    $region4: #{itw_lstm_forward.1} parent=1 // loop_header_branch
      %25 = sbr.rel (%p23) target = $region8
    $region5: #{itw_lstm_forward.1} parent=1 // loop_body
      %s27 = ssub.s32 %s22, 1
      %s28 = ssub.s32 %s22, 2
      %s29 = sadd.s32 %s22, 1
      %s30 = ssub.s32 %s22, %s29
      %p31 = scmp.eq.s32.totalorder %s30, 0
      %s33 = sadd.s32 %s32, 1
      %s34 = scalar_select %p31, %s32, %s33
      %p37 = pneg %p31
      %p38 = scmp.eq.s32.totalorder %s22, 1
      %p39 = por %p37, %p38
      %p40 = scmp.ne.s32.totalorder %s32, %s35
      %p41 = scmp.eq.s32.totalorder %s22, 0
      %p42 = por %p40, %p41
      %p43 = scmp.ne.s32.totalorder %s32, %s35
      %p44 = scmp.eq.s32.totalorder %s27, 1
      %p45 = por %p43, %p44
      %p46 = scmp.ne.s32.totalorder %s35, %s36
      %p47 = scmp.eq.s32.totalorder %s27, 0
      %p48 = por %p46, %p47
      %p49 = scmp.ne.s32.totalorder %s35, %s36
      %p50 = scmp.eq.s32.totalorder %s28, 1
      %p51 = por %p49, %p50
      %p53 = scmp.ne.s32.totalorder %s36, %s52
      %p54 = scmp.eq.s32.totalorder %s28, 0
      %p55 = por %p53, %p54
      %s57 = sadd.s32 %s56, 1
      %p60 = scmp.eq.s32.totalorder %s22, 1
      %p61 = scmp.ne.s32.totalorder %s56, %s58
      %p62 = scmp.eq.s32.totalorder %s22, 0
      %p63 = por %p61, %p62
      %p64 = scmp.ne.s32.totalorder %s56, %s58
      %p65 = scmp.eq.s32.totalorder %s27, 1
      %p66 = por %p64, %p65
      %p67 = scmp.ne.s32.totalorder %s58, %s59
      %p68 = scmp.eq.s32.totalorder %s27, 0
      %p69 = por %p67, %p68
      %p70 = scmp.ne.s32.totalorder %s58, %s59
      %p71 = scmp.eq.s32.totalorder %s28, 1
      %p72 = por %p70, %p71
      %p74 = scmp.ne.s32.totalorder %s59, %s73
      %p75 = scmp.eq.s32.totalorder %s28, 0
      %p76 = por %p74, %p75
      %s78 = sadd.s32 %s77, 1
      %p81 = scmp.eq.s32.totalorder %s22, 1
      %p82 = scmp.ne.s32.totalorder %s77, %s79
      %p83 = scmp.eq.s32.totalorder %s22, 0
      %p84 = por %p82, %p83
      %p85 = scmp.ne.s32.totalorder %s77, %s79
      %p86 = scmp.eq.s32.totalorder %s27, 1
      %p87 = por %p85, %p86
      %p88 = scmp.ne.s32.totalorder %s79, %s80
      %p89 = scmp.eq.s32.totalorder %s27, 0
      %p90 = por %p88, %p89
      %p91 = scmp.ne.s32.totalorder %s79, %s80
      %p92 = scmp.eq.s32.totalorder %s28, 1
      %p93 = por %p91, %p92
      %p95 = scmp.ne.s32.totalorder %s80, %s94
      %p96 = scmp.eq.s32.totalorder %s28, 0
      %p97 = por %p95, %p96
      %s99 = sadd.s32 %s98, 1
      %p102 = scmp.eq.s32.totalorder %s22, 1
      %p103 = scmp.ne.s32.totalorder %s98, %s100
      %p104 = scmp.eq.s32.totalorder %s22, 0
      %p105 = por %p103, %p104
      %p106 = scmp.ne.s32.totalorder %s98, %s100
      %p107 = scmp.eq.s32.totalorder %s27, 1
      %p108 = por %p106, %p107
      %p109 = scmp.ne.s32.totalorder %s100, %s101
      %p110 = scmp.eq.s32.totalorder %s27, 0
      %p111 = por %p109, %p110
      %p112 = scmp.ne.s32.totalorder %s100, %s101
      %p113 = scmp.eq.s32.totalorder %s28, 1
      %p114 = por %p112, %p113
      %p116 = scmp.ne.s32.totalorder %s101, %s115
      %p117 = scmp.eq.s32.totalorder %s28, 0
      %p118 = por %p116, %p117
      %s120 = sadd.s32 %s119, 1
      %p123 = scmp.eq.s32.totalorder %s22, 1
      %p124 = scmp.ne.s32.totalorder %s119, %s121
      %p125 = scmp.eq.s32.totalorder %s22, 0
      %p126 = por %p124, %p125
      %p127 = scmp.ne.s32.totalorder %s119, %s121
      %p128 = scmp.eq.s32.totalorder %s27, 1
      %p129 = por %p127, %p128
      %p130 = scmp.ne.s32.totalorder %s121, %s122
      %p131 = scmp.eq.s32.totalorder %s27, 0
      %p132 = por %p130, %p131
      %p133 = scmp.ne.s32.totalorder %s121, %s122
      %p134 = scmp.eq.s32.totalorder %s28, 1
      %p135 = por %p133, %p134
      %p137 = scmp.ne.s32.totalorder %s122, %s136
      %p138 = scmp.eq.s32.totalorder %s28, 0
      %p139 = por %p137, %p138
      %s141 = sadd.s32 %s140, 1
      %p144 = scmp.eq.s32.totalorder %s22, 1
      %p145 = scmp.ne.s32.totalorder %s140, %s142
      %p146 = scmp.eq.s32.totalorder %s22, 0
      %p147 = por %p145, %p146
      %p148 = scmp.ne.s32.totalorder %s140, %s142
      %p149 = scmp.eq.s32.totalorder %s27, 1
      %p150 = por %p148, %p149
      %p151 = scmp.ne.s32.totalorder %s142, %s143
      %p152 = scmp.eq.s32.totalorder %s27, 0
      %p153 = por %p151, %p152
      %p154 = scmp.ne.s32.totalorder %s142, %s143
      %p155 = scmp.eq.s32.totalorder %s28, 1
      %p156 = por %p154, %p155
      %p158 = scmp.ne.s32.totalorder %s143, %s157
      %p159 = scmp.eq.s32.totalorder %s28, 0
      %p160 = por %p158, %p159
      %s162 = sadd.s32 %s161, 1
      %p165 = scmp.eq.s32.totalorder %s22, 1
      %p166 = scmp.ne.s32.totalorder %s161, %s163
      %p167 = scmp.eq.s32.totalorder %s22, 0
      %p168 = por %p166, %p167
      %p169 = scmp.ne.s32.totalorder %s161, %s163
      %p170 = scmp.eq.s32.totalorder %s27, 1
      %p171 = por %p169, %p170
      %p172 = scmp.ne.s32.totalorder %s163, %s164
      %p173 = scmp.eq.s32.totalorder %s27, 0
      %p174 = por %p172, %p173
      %p175 = scmp.ne.s32.totalorder %s163, %s164
      %p176 = scmp.eq.s32.totalorder %s28, 1
      %p177 = por %p175, %p176
      %p179 = scmp.ne.s32.totalorder %s164, %s178
      %p180 = scmp.eq.s32.totalorder %s28, 0
      %p181 = por %p179, %p180
      %s183 = sadd.s32 %s182, 1
      %p186 = scmp.eq.s32.totalorder %s22, 1
      %p187 = scmp.ne.s32.totalorder %s182, %s184
      %p188 = scmp.eq.s32.totalorder %s22, 0
      %p189 = por %p187, %p188
      %p190 = scmp.ne.s32.totalorder %s182, %s184
      %p191 = scmp.eq.s32.totalorder %s27, 1
      %p192 = por %p190, %p191
      %p193 = scmp.ne.s32.totalorder %s184, %s185
      %p194 = scmp.eq.s32.totalorder %s27, 0
      %p195 = por %p193, %p194
      %p196 = scmp.ne.s32.totalorder %s184, %s185
      %p197 = scmp.eq.s32.totalorder %s28, 1
      %p198 = por %p196, %p197
      %p200 = scmp.ne.s32.totalorder %s185, %s199
      %p201 = scmp.eq.s32.totalorder %s28, 0
      %p202 = por %p200, %p201
      %s204 = sadd.s32 %s203, 1
      %p207 = scmp.eq.s32.totalorder %s22, 1
      %p208 = scmp.ne.s32.totalorder %s203, %s205
      %p209 = scmp.eq.s32.totalorder %s22, 0
      %p210 = por %p208, %p209
      %p211 = scmp.ne.s32.totalorder %s203, %s205
      %p212 = scmp.eq.s32.totalorder %s27, 1
      %p213 = por %p211, %p212
      %p214 = scmp.ne.s32.totalorder %s205, %s206
      %p215 = scmp.eq.s32.totalorder %s27, 0
      %p216 = por %p214, %p215
      %p217 = scmp.ne.s32.totalorder %s205, %s206
      %p218 = scmp.eq.s32.totalorder %s28, 1
      %p219 = por %p217, %p218
      %p221 = scmp.ne.s32.totalorder %s206, %s220
      %p222 = scmp.eq.s32.totalorder %s28, 0
      %p223 = por %p221, %p222
      %s225 = sadd.s32 %s224, 1
      %p228 = scmp.eq.s32.totalorder %s22, 1
      %p229 = scmp.ne.s32.totalorder %s224, %s226
      %p230 = scmp.eq.s32.totalorder %s22, 0
      %p231 = por %p229, %p230
      %p232 = scmp.ne.s32.totalorder %s224, %s226
      %p233 = scmp.eq.s32.totalorder %s27, 1
      %p234 = por %p232, %p233
      %p235 = scmp.ne.s32.totalorder %s226, %s227
      %p236 = scmp.eq.s32.totalorder %s27, 0
      %p237 = por %p235, %p236
      %p238 = scmp.ne.s32.totalorder %s226, %s227
      %p239 = scmp.eq.s32.totalorder %s28, 1
      %p240 = por %p238, %p239
      %p242 = scmp.ne.s32.totalorder %s227, %s241
      %p243 = scmp.eq.s32.totalorder %s28, 0
      %p244 = por %p242, %p243
      %s246 = sadd.s32 %s245, 1
      %p249 = scmp.eq.s32.totalorder %s22, 1
      %p250 = scmp.ne.s32.totalorder %s245, %s247
      %p251 = scmp.eq.s32.totalorder %s22, 0
      %p252 = por %p250, %p251
      %p253 = scmp.ne.s32.totalorder %s245, %s247
      %p254 = scmp.eq.s32.totalorder %s27, 1
      %p255 = por %p253, %p254
      %p256 = scmp.ne.s32.totalorder %s247, %s248
      %p257 = scmp.eq.s32.totalorder %s27, 0
      %p258 = por %p256, %p257
      %p259 = scmp.ne.s32.totalorder %s247, %s248
      %p260 = scmp.eq.s32.totalorder %s28, 1
      %p261 = por %p259, %p260
      %p263 = scmp.ne.s32.totalorder %s248, %s262
      %p264 = scmp.eq.s32.totalorder %s28, 0
      %p265 = por %p263, %p264
      %s267 = sadd.s32 %s266, 1
      %p270 = scmp.eq.s32.totalorder %s22, 1
      %p271 = scmp.ne.s32.totalorder %s266, %s268
      %p272 = scmp.eq.s32.totalorder %s22, 0
      %p273 = por %p271, %p272
      %p274 = scmp.ne.s32.totalorder %s266, %s268
      %p275 = scmp.eq.s32.totalorder %s27, 1
      %p276 = por %p274, %p275
      %p277 = scmp.ne.s32.totalorder %s268, %s269
      %p278 = scmp.eq.s32.totalorder %s27, 0
      %p279 = por %p277, %p278
      %p280 = scmp.ne.s32.totalorder %s268, %s269
      %p281 = scmp.eq.s32.totalorder %s28, 1
      %p282 = por %p280, %p281
      %p284 = scmp.ne.s32.totalorder %s269, %s283
      %p285 = scmp.eq.s32.totalorder %s28, 0
      %p286 = por %p284, %p285
      %s288 = sadd.s32 %s287, 1
      %p291 = scmp.eq.s32.totalorder %s22, 1
      %p292 = scmp.ne.s32.totalorder %s287, %s289
      %p293 = scmp.eq.s32.totalorder %s22, 0
      %p294 = por %p292, %p293
      %p295 = scmp.ne.s32.totalorder %s287, %s289
      %p296 = scmp.eq.s32.totalorder %s27, 1
      %p297 = por %p295, %p296
      %p298 = scmp.ne.s32.totalorder %s289, %s290
      %p299 = scmp.eq.s32.totalorder %s27, 0
      %p300 = por %p298, %p299
      %p301 = scmp.ne.s32.totalorder %s289, %s290
      %p302 = scmp.eq.s32.totalorder %s28, 1
      %p303 = por %p301, %p302
      %p305 = scmp.ne.s32.totalorder %s290, %s304
      %p306 = scmp.eq.s32.totalorder %s28, 0
      %p307 = por %p305, %p306
      %s308 = ssub.s32 %s22, %s29
      %p309 = scmp.eq.s32.totalorder %s308, 0
      %s311 = sadd.s32 %s310, 1
      %s312 = scalar_select %p309, %s310, %s311
      %p315 = pneg %p309
      %p316 = scmp.eq.s32.totalorder %s22, 1
      %p317 = por %p315, %p316
      %p318 = scmp.ne.s32.totalorder %s310, %s313
      %p319 = scmp.eq.s32.totalorder %s22, 0
      %p320 = por %p318, %p319
      %p321 = scmp.ne.s32.totalorder %s310, %s313
      %p322 = scmp.eq.s32.totalorder %s27, 1
      %p323 = por %p321, %p322
      %p324 = scmp.ne.s32.totalorder %s313, %s314
      %p325 = scmp.eq.s32.totalorder %s27, 0
      %p326 = por %p324, %p325
      %p327 = scmp.ne.s32.totalorder %s313, %s314
      %p328 = scmp.eq.s32.totalorder %s28, 1
      %p329 = por %p327, %p328
      %p331 = scmp.ne.s32.totalorder %s314, %s330
      %p332 = scmp.eq.s32.totalorder %s28, 0
      %p333 = por %p331, %p332
      %p334 = scmp.le.s32.totalorder 1, %s22
      %p335 = scmp.lt.s32.totalorder %s22, 3
      %p336 = pnand %p334, %p335
      %p337 = pneg %p336
      // Predicated region
      $region9: #{itw_lstm_forward.1} parent=5 // pred_check
        _
      $region10: #{itw_lstm_forward.1} parent=5 // pred_check_branch
        %339 = sbr.rel (%p336) target = $region12
      $region11: #{itw_lstm_forward.1} parent=5 // pred_region
        %s340 = ssub.s32 %s22, 1
        // Predicated region
        $region13: #{itw_lstm_forward.1} parent=11 // pred_check
          %p341 = pneg %p69
        $region14: #{itw_lstm_forward.1} parent=11 // pred_check_branch
          %343 = sbr.rel (%p341) target = $region16
        $region15: #{itw_lstm_forward.1} parent=11 // pred_region
          _
        $region16: #{itw_lstm_forward.1} parent=11 // pred_fallthru
          _
        // Predicated region
        $region17: #{itw_lstm_forward.1} parent=11 // pred_check
          %p344 = pneg %p90
        $region18: #{itw_lstm_forward.1} parent=11 // pred_check_branch
          %346 = sbr.rel (%p344) target = $region20
        $region19: #{itw_lstm_forward.1} parent=11 // pred_region
          _
        $region20: #{itw_lstm_forward.1} parent=11 // pred_fallthru
          _
        // Predicated region
        $region21: #{itw_lstm_forward.1} parent=11 // pred_check
          %p347 = pneg %p111
        $region22: #{itw_lstm_forward.1} parent=11 // pred_check_branch
          %349 = sbr.rel (%p347) target = $region24
        $region23: #{itw_lstm_forward.1} parent=11 // pred_region
          _
        $region24: #{itw_lstm_forward.1} parent=11 // pred_fallthru
          _
        // Predicated region
        $region25: #{itw_lstm_forward.1} parent=11 // pred_check
          %p350 = pneg %p132
        $region26: #{itw_lstm_forward.1} parent=11 // pred_check_branch
          %352 = sbr.rel (%p350) target = $region28
        $region27: #{itw_lstm_forward.1} parent=11 // pred_region
          %354 = vsyncadd [#allocation7], 0
          %s355 = sshll.u32 %s4, 4
          %s356 = int_to_ptr.hbm [resolvable:$true] %s355
          %s357 = sshll.u32 [#allocation6], 4
          %s358 = int_to_ptr.vmem [resolvable:$true] %s357
          %363 = dma.hbm_to_vmem [thread:$0]  %s356, 256, %s358, [#allocation7], 64, 64, 4
        $region28: #{itw_lstm_forward.1} parent=11 // pred_fallthru
          _
        // Predicated region
        $region29: #{itw_lstm_forward.1} parent=11 // pred_check
          %p364 = pneg %p153
        $region30: #{itw_lstm_forward.1} parent=11 // pred_check_branch
          %366 = sbr.rel (%p364) target = $region32
        $region31: #{itw_lstm_forward.1} parent=11 // pred_region
          %368 = vsyncadd [#allocation9], 0
          %s369 = sshll.u32 %s5, 4
          %s370 = int_to_ptr.hbm [resolvable:$true] %s369
          %s371 = sshll.u32 [#allocation8], 4
          %s372 = int_to_ptr.vmem [resolvable:$true] %s371
          %377 = dma.hbm_to_vmem [thread:$0]  %s370, 256, %s372, [#allocation9], 64, 64, 4
        $region32: #{itw_lstm_forward.1} parent=11 // pred_fallthru
          _
        // Predicated region
        $region33: #{itw_lstm_forward.1} parent=11 // pred_check
          %p378 = pneg %p174
        $region34: #{itw_lstm_forward.1} parent=11 // pred_check_branch
          %380 = sbr.rel (%p378) target = $region36
        $region35: #{itw_lstm_forward.1} parent=11 // pred_region
          _
        $region36: #{itw_lstm_forward.1} parent=11 // pred_fallthru
          _
        // Predicated region
        $region37: #{itw_lstm_forward.1} parent=11 // pred_check
          %p381 = pneg %p195
        $region38: #{itw_lstm_forward.1} parent=11 // pred_check_branch
          %383 = sbr.rel (%p381) target = $region40
        $region39: #{itw_lstm_forward.1} parent=11 // pred_region
          %385 = vsyncadd [#allocation9], 0
          %s386 = sshll.u32 %s7, 4
          %s387 = int_to_ptr.hbm [resolvable:$true] %s386
          %s388 = sshll.u32 [#allocation10], 4
          %s389 = int_to_ptr.vmem [resolvable:$true] %s388
          %394 = dma.hbm_to_vmem [thread:$0]  %s387, 256, %s389, [#allocation9], 64, 64, 4
        $region40: #{itw_lstm_forward.1} parent=11 // pred_fallthru
          _
        // Predicated region
        $region41: #{itw_lstm_forward.1} parent=11 // pred_check
          %p395 = pneg %p216
        $region42: #{itw_lstm_forward.1} parent=11 // pred_check_branch
          %397 = sbr.rel (%p395) target = $region44
        $region43: #{itw_lstm_forward.1} parent=11 // pred_region
          _
        $region44: #{itw_lstm_forward.1} parent=11 // pred_fallthru
          _
        // Predicated region
        $region45: #{itw_lstm_forward.1} parent=11 // pred_check
          %p398 = pneg %p237
        $region46: #{itw_lstm_forward.1} parent=11 // pred_check_branch
          %400 = sbr.rel (%p398) target = $region48
        $region47: #{itw_lstm_forward.1} parent=11 // pred_region
          %402 = vsyncadd [#allocation12], 0
          %s403 = sshll.u32 %s9, 4
          %s404 = int_to_ptr.hbm [resolvable:$true] %s403
          %s405 = sshll.u32 [#allocation11], 4
          %s406 = int_to_ptr.vmem [resolvable:$true] %s405
          %411 = dma.hbm_to_vmem [thread:$0]  %s404, 256, %s406, [#allocation12], 64, 64, 4
        $region48: #{itw_lstm_forward.1} parent=11 // pred_fallthru
          _
        // Predicated region
        $region49: #{itw_lstm_forward.1} parent=11 // pred_check
          %p412 = pneg %p258
        $region50: #{itw_lstm_forward.1} parent=11 // pred_check_branch
          %414 = sbr.rel (%p412) target = $region52
        $region51: #{itw_lstm_forward.1} parent=11 // pred_region
          _
        $region52: #{itw_lstm_forward.1} parent=11 // pred_fallthru
          _
        // Predicated region
        $region53: #{itw_lstm_forward.1} parent=11 // pred_check
          %p415 = pneg %p279
        $region54: #{itw_lstm_forward.1} parent=11 // pred_check_branch
          %417 = sbr.rel (%p415) target = $region56
        $region55: #{itw_lstm_forward.1} parent=11 // pred_region
          %419 = vsyncadd [#allocation12], 0
          %s420 = sshll.u32 %s11, 4
          %s421 = int_to_ptr.hbm [resolvable:$true] %s420
          %s422 = sshll.u32 [#allocation13], 4
          %s423 = int_to_ptr.vmem [resolvable:$true] %s422
          %428 = dma.hbm_to_vmem [thread:$0]  %s421, 256, %s423, [#allocation12], 64, 64, 4
        $region56: #{itw_lstm_forward.1} parent=11 // pred_fallthru
          _
        // Predicated region
        $region57: #{itw_lstm_forward.1} parent=11 // pred_check
          %p429 = pneg %p300
        $region58: #{itw_lstm_forward.1} parent=11 // pred_check_branch
          %431 = sbr.rel (%p429) target = $region60
        $region59: #{itw_lstm_forward.1} parent=11 // pred_region
          _
        $region60: #{itw_lstm_forward.1} parent=11 // pred_fallthru
          _
      $region12: #{itw_lstm_forward.1} parent=5 // pred_fallthru
        _
      %p432 = scmp.lt.s32.totalorder %s22, 2
      // Predicated region
      $region61: #{itw_lstm_forward.1} parent=5 // pred_check
        %p433 = pneg %p432
      $region62: #{itw_lstm_forward.1} parent=5 // pred_check_branch
        %435 = sbr.rel (%p433) target = $region64
      $region63: #{itw_lstm_forward.1} parent=5 // pred_region
        // Predicated region
        $region65: #{itw_lstm_forward.1} parent=63 // pred_check
          %p436 = pneg %p42
        $region66: #{itw_lstm_forward.1} parent=63 // pred_check_branch
          %438 = sbr.rel (%p436) target = $region68
        $region67: #{itw_lstm_forward.1} parent=63 // pred_region
          %s439 = smul.u32 4, %s22
          %p440 = scmp.lt.s32.totalorder %s439, 7
          %s441 = scalar_select %p440, %s439, 7
          %s442 = smul.addr %s441, 4
          %s443 = scalar_lea.vmem %s0, %s442
          %s444 = smul.u32 4, %s22
        $region68: #{itw_lstm_forward.1} parent=63 // pred_fallthru
          _
      $region64: #{itw_lstm_forward.1} parent=5 // pred_fallthru
        _
      %p445 = scmp.le.s32.totalorder 1, %s22
      %p446 = scmp.lt.s32.totalorder %s22, 3
      %p447 = pnand %p445, %p446
      %p448 = pneg %p447
      // Predicated region
      $region69: #{itw_lstm_forward.1} parent=5 // pred_check
        _
      $region70: #{itw_lstm_forward.1} parent=5 // pred_check_branch
        %450 = sbr.rel (%p447) target = $region72
      $region71: #{itw_lstm_forward.1} parent=5 // pred_region
        %s451 = ssub.s32 %s22, 1
        // Predicated region
        $region73: #{itw_lstm_forward.1} parent=71 // pred_check
          %p452 = pneg %p132
        $region74: #{itw_lstm_forward.1} parent=71 // pred_check_branch
          %454 = sbr.rel (%p452) target = $region76
        $region75: #{itw_lstm_forward.1} parent=71 // pred_region
          %456 = dma.done [#allocation7], 256
        $region76: #{itw_lstm_forward.1} parent=71 // pred_fallthru
          _
        // Predicated region
        $region77: #{itw_lstm_forward.1} parent=71 // pred_check
          %p457 = pneg %p153
        $region78: #{itw_lstm_forward.1} parent=71 // pred_check_branch
          %459 = sbr.rel (%p457) target = $region80
        $region79: #{itw_lstm_forward.1} parent=71 // pred_region
          %461 = dma.done [#allocation9], 256
        $region80: #{itw_lstm_forward.1} parent=71 // pred_fallthru
          _
        // Predicated region
        $region81: #{itw_lstm_forward.1} parent=71 // pred_check
          %p462 = pneg %p195
        $region82: #{itw_lstm_forward.1} parent=71 // pred_check_branch
          %464 = sbr.rel (%p462) target = $region84
        $region83: #{itw_lstm_forward.1} parent=71 // pred_region
          %466 = dma.done [#allocation9], 256
        $region84: #{itw_lstm_forward.1} parent=71 // pred_fallthru
          _
        // Predicated region
        $region85: #{itw_lstm_forward.1} parent=71 // pred_check
          %p467 = pneg %p237
        $region86: #{itw_lstm_forward.1} parent=71 // pred_check_branch
          %469 = sbr.rel (%p467) target = $region88
        $region87: #{itw_lstm_forward.1} parent=71 // pred_region
          %471 = dma.done [#allocation12], 256
        $region88: #{itw_lstm_forward.1} parent=71 // pred_fallthru
          _
        // Predicated region
        $region89: #{itw_lstm_forward.1} parent=71 // pred_check
          %p472 = pneg %p279
        $region90: #{itw_lstm_forward.1} parent=71 // pred_check_branch
          %474 = sbr.rel (%p472) target = $region92
        $region91: #{itw_lstm_forward.1} parent=71 // pred_region
          %476 = dma.done [#allocation12], 256
        $region92: #{itw_lstm_forward.1} parent=71 // pred_fallthru
          _
        %s477 = smul.u32 4, %s27
        %p478 = scmp.lt.s32.totalorder %s477, 7
        %s479 = scalar_select %p478, %s477, 7
        %s480 = smul.addr %s479, 4
        %s481 = scalar_lea.vmem %s0, %s480
        %p482 = pneg %p48
        %p483 = pneg %p45
        %p484 = pneg %p69
        %p485 = pneg %p66
        %p486 = pneg %p90
        %p487 = pneg %p87
        %p488 = pneg %p111
        %p489 = pneg %p108
        %p490 = pneg %p132
        %p491 = pneg %p129
        %p492 = pneg %p153
        %p493 = pneg %p150
        %p494 = pneg %p174
        %p495 = pneg %p171
        %p496 = pneg %p195
        %p497 = pneg %p192
        %p498 = pneg %p216
        %p499 = pneg %p213
        %p500 = pneg %p237
        %p501 = pneg %p234
        %p502 = pneg %p258
        %p503 = pneg %p255
        %p504 = pneg %p279
        %p505 = pneg %p276
        %p506 = pneg %p300
        %p507 = pneg %p297
        %p508 = pneg %p326
        %p509 = pneg %p323
        %s510 = smul.u32 4, %s27
        %p511 = scmp.lt.s32.totalorder %s510, 7
        %s512 = scalar_select %p511, %s510, 7
        %s513 = smul.addr %s512, 8
        %s514 = scalar_lea.vmem %s13, %s513
        %s515 = smul.u32 4, %s27
        %p516 = scmp.lt.s32.totalorder %s515, 7
        %s517 = scalar_select %p516, %s515, 7
        %s518 = smul.addr %s517, 4
        %s519 = scalar_lea.vmem %s0, %s518
        %s520 = smul.u32 4, %s27
        %s521 = smul.u32 4, %s27
        %p522 = scmp.lt.s32.totalorder %s521, 7
        %s523 = scalar_select %p522, %s521, 7
        %s524 = smul.addr %s523, 8
        %s525 = scalar_lea.vmem %s13, %s524
        %s526 = smul.u32 4, %s27
        %p528 = scmp.eq.s32.totalorder %s27, 0
        // Predicated region
        $region93: #{itw_lstm_forward.1} parent=71 // pred_check
          %p529 = pneg %p528
        $region94: #{itw_lstm_forward.1} parent=71 // pred_check_branch
          %531 = sbr.rel (%p529) target = $region96
        $region95: #{itw_lstm_forward.1} parent=71 // pred_region
          %vm532 = vcmask 261120
          %533 = vst.msk [vmem:[#allocation4] sm:$0xff] %vm532, 0.0
          %534 = vst.msk [vmem:[#allocation4 + $0x8] sm:$0xff] %vm532, 0.0
          %535 = vst.msk [vmem:[#allocation5] sm:$0xff] %vm532, 0.0
          %536 = vst.msk [vmem:[#allocation5 + $0x8] sm:$0xff] %vm532, 0.0
        $region96: #{itw_lstm_forward.1} parent=71 // pred_fallthru
          _
        %v537 = vld [vmem:[%s519] sm:$0xf]
        %v538 = vld [vmem:[%s519 + $0x4] sm:$0xf]
        %v539 = vld [vmem:[%s519 + $0x8] sm:$0xf]
        %v540 = vld [vmem:[%s519 + $0xc] sm:$0xf]
        %v541 = vld [vmem:[%s1] sm:$0xf]
        %v542 = vld [vmem:[%s1 + $0x4] sm:$0xf]
        %v543 = vld [vmem:[%s1 + $0x8] sm:$0xf]
        %v544 = vld [vmem:[%s1 + $0xc] sm:$0xf]
        %v545 = vld [vmem:[%s1 + $0x10] sm:$0xf]
        %v546 = vld [vmem:[%s1 + $0x14] sm:$0xf]
        %v547 = vld [vmem:[%s1 + $0x18] sm:$0xf]
        %v548 = vld [vmem:[%s1 + $0x1c] sm:$0xf]
        %v549 = vld [vmem:[%s1 + $0x20] sm:$0xf]
        %v550 = vld [vmem:[%s1 + $0x24] sm:$0xf]
        %v551 = vld [vmem:[%s1 + $0x28] sm:$0xf]
        %v552 = vld [vmem:[%s1 + $0x2c] sm:$0xf]
        %v553 = vld [vmem:[%s1 + $0x30] sm:$0xf]
        %v554 = vld [vmem:[%s1 + $0x34] sm:$0xf]
        %v555 = vld [vmem:[%s1 + $0x38] sm:$0xf]
        %v556 = vld [vmem:[%s1 + $0x3c] sm:$0xf]
        %v557 = vld [vmem:[%s3] sm:$0x1]
        %v559 = vperm.slane %v557, 0
        %v565 = vunpack.c.l.b16 %v537
        %v566 = vunpack.c.l.b16 %v538
        %v567 = vunpack.c.l.b16 %v539
        %v568 = vunpack.c.l.b16 %v540
        %v569 = vpack.c.b16 %v566, %v565
        %v570 = vpack.c.b16 %v568, %v567
        %v589 = vunpack.c.l.b16 %v541
        %v590 = vunpack.c.l.b16 %v542
        %v591 = vunpack.c.l.b16 %v543
        %v592 = vunpack.c.l.b16 %v544
        %v593 = vunpack.c.l.b16 %v545
        %v594 = vunpack.c.l.b16 %v546
        %v595 = vunpack.c.l.b16 %v547
        %v596 = vunpack.c.l.b16 %v548
        %v597 = vunpack.c.l.b16 %v549
        %v598 = vunpack.c.l.b16 %v550
        %v599 = vunpack.c.l.b16 %v551
        %v600 = vunpack.c.l.b16 %v552
        %v601 = vunpack.c.l.b16 %v553
        %v602 = vunpack.c.l.b16 %v554
        %v603 = vunpack.c.l.b16 %v555
        %v604 = vunpack.c.l.b16 %v556
        %v605 = vpack.c.b16 %v590, %v589
        %v606 = vpack.c.b16 %v592, %v591
        %v607 = vpack.c.b16 %v594, %v593
        %v608 = vpack.c.b16 %v596, %v595
        %v609 = vpack.c.b16 %v598, %v597
        %v610 = vpack.c.b16 %v600, %v599
        %v611 = vpack.c.b16 %v602, %v601
        %v612 = vpack.c.b16 %v604, %v603
        %621 = vmatpush.bf16.msra.mxu0 %v612
        %622 = vmatpush.bf16.msra.mxu0 %v611
        %623 = vmatpush.bf16.msra.mxu0 %v610
        %624 = vmatpush.bf16.msra.mxu0 %v609
        %625 = vmatpush.bf16.msra.mxu0 %v608
        %626 = vmatpush.bf16.msra.mxu0 %v607
        %627 = vmatpush.bf16.msra.mxu0 %v606
        %628 = vmatpush.bf16.msra.mxu0 %v605
        %629 = vmatmul.bf16.gmra.mxu0 %v569
        %v630 = vpop.f32.mrf.mxu0
        %v631 = vadd.f32 %v559, %v630
        %v632 = vpop.f32.mrf.mxu0
        %v633 = vadd.f32 %v559, %v632
        %634 = vmatmul.bf16.gmra.mxu0 %v570
        %v635 = vpop.f32.mrf.mxu0
        %v636 = vadd.f32 %v559, %v635
        %v637 = vpop.f32.mrf.mxu0
        %v638 = vadd.f32 %v559, %v637
        %639 = vdwg.mxu0
        %640 = vst [vmem:[#allocation3] sm:$0xff] %v631
        %641 = vst [vmem:[#allocation3 + $0x8] sm:$0xff] %v633
        %642 = vst [vmem:[#allocation3 + $0x10] sm:$0xff] %v636
        %643 = vst [vmem:[#allocation3 + $0x18] sm:$0xff] %v638
        %v644 = vld [vmem:[%s2] sm:$0xf]
        %v645 = vld [vmem:[%s2 + $0x4] sm:$0xf]
        %v646 = vld [vmem:[%s2 + $0x8] sm:$0xf]
        %v647 = vld [vmem:[%s2 + $0xc] sm:$0xf]
        %v648 = vlaneseq
        %v649 = vand.u32 %v648, 127
        %vm650 = vcmp.ge.s32.totalorder %v649, 64
        %vm651 = vcmp.lt.s32.totalorder %v649, 96
        %vm652 = vmand %vm650, %vm651
        %v653 = vld [vmem:[#allocation4] sm:$0xff]
        %v654 = vld [vmem:[#allocation5] sm:$0xff]
        %v655 = vld [vmem:[#allocation3] sm:$0xff]
        %v656 = vpack.c.bf16 %v653, %v653
        %v661 = vunpack.c.l.b16 %v644
        %v662 = vunpack.c.l.b16 %v645
        %v663 = vunpack.c.l.b16 %v646
        %v664 = vunpack.c.l.b16 %v647
        %v665 = vpack.c.b16 %v662, %v661
        %v666 = vpack.c.b16 %v664, %v663
        %vm669 = vcmask 261120
        %v671 = vsel %vm669, %v656, 0
        %673 = vmatpush.bf16.msra.mxu0 0
        %674 = vmatpush.bf16.msra.mxu0 0
        %675 = vmatpush.bf16.msra.mxu0 0
        %676 = vmatpush.bf16.msra.mxu0 0
        %677 = vmatpush.bf16.msra.mxu0 0
        %678 = vmatpush.bf16.msra.mxu0 0
        %679 = vmatpush.bf16.msra.mxu0 %v666
        %680 = vmatpush.bf16.msra.mxu0 %v665
        %681 = vmatmul.bf16.gmra.mxu0 %v671
        %v682 = vpop.f32.mrf.mxu0
        %v683 = vadd.f32 0.0, %v682
        %v684 = vpop.f32.mrf.mxu0
        %685 = vdwg.mxu0
        %v686 = vadd.f32 %v655, %v683
        %v687 = vmul.f32 %v686, 0.5
        %v688 = vsel %vm652, %v686, %v687
        %v689 = vtanh.pop %v688
        %v690 = vadd.f32 %v689, 1.0
        %v691 = vmul.f32 %v690, 0.5
        %v692 = vsel %vm652, %v689, %v691
        %694 = vrot.lane.b32.xlu0 %v654, 32
        %v695 = vpop.permute.xlu0 %694
        %v697 = vmul.f32 %v692, %v695
        %699 = vrot.lane.b32.xlu0 %v692, 64
        %v700 = vpop.permute.xlu0 %699
        %v702 = vmul.f32 %v692, %v700
        %704 = vrot.lane.b32.xlu0 %v702, 32
        %v705 = vpop.permute.xlu0 %704
        %v707 = vadd.f32 %v697, %v705
        %v708 = vtanh.pop %v707
        %710 = vrot.lane.b32.xlu0 %v708, 64
        %v711 = vpop.permute.xlu0 %710
        %v713 = vmul.f32 %v692, %v711
        %715 = vrot.lane.b32.xlu0 %v713, 32
        %v716 = vpop.permute.xlu0 %715
        %718 = vst.msk [vmem:[#allocation2] sm:$0xff] %vm669, %v716
        %s719 = scalar_lea.vmem [#allocation3], 8
        %v720 = vld [vmem:[%s719] sm:$0xff]
        %v721 = vpack.c.bf16 %v713, %v713
        %723 = vrot.lane.b32.xlu0 %v721, 32
        %v724 = vpop.permute.xlu0 %723
        %v726 = vsel %vm669, %v724, 0
        %728 = vmatpush.bf16.msra.mxu0 0
        %729 = vmatpush.bf16.msra.mxu0 0
        %730 = vmatpush.bf16.msra.mxu0 0
        %731 = vmatpush.bf16.msra.mxu0 0
        %732 = vmatpush.bf16.msra.mxu0 0
        %733 = vmatpush.bf16.msra.mxu0 0
        %734 = vmatpush.bf16.msra.mxu0 %v666
        %735 = vmatpush.bf16.msra.mxu0 %v665
        %736 = vmatmul.bf16.gmra.mxu0 %v726
        %v737 = vpop.f32.mrf.mxu0
        %v738 = vadd.f32 0.0, %v737
        %v739 = vpop.f32.mrf.mxu0
        %740 = vdwg.mxu0
        %v741 = vadd.f32 %v720, %v738
        %v742 = vmul.f32 %v741, 0.5
        %v743 = vsel %vm652, %v741, %v742
        %v744 = vtanh.pop %v743
        %v745 = vadd.f32 %v744, 1.0
        %v746 = vmul.f32 %v745, 0.5
        %v747 = vsel %vm652, %v744, %v746
        %v748 = vmul.f32 %v747, %v707
        %750 = vrot.lane.b32.xlu0 %v747, 64
        %v751 = vpop.permute.xlu0 %750
        %v753 = vmul.f32 %v747, %v751
        %755 = vrot.lane.b32.xlu0 %v753, 32
        %v756 = vpop.permute.xlu0 %755
        %v758 = vadd.f32 %v748, %v756
        %v759 = vtanh.pop %v758
        %761 = vrot.lane.b32.xlu0 %v759, 64
        %v762 = vpop.permute.xlu0 %761
        %v764 = vmul.f32 %v747, %v762
        %766 = vrot.lane.b32.xlu0 %v764, 32
        %v767 = vpop.permute.xlu0 %766
        %s769 = scalar_lea.vmem [#allocation2], 8
        %770 = vst.msk [vmem:[%s769] sm:$0xff] %vm669, %v767
        %s771 = scalar_lea.vmem [#allocation3], 16
        %v772 = vld [vmem:[%s771] sm:$0xff]
        %v773 = vpack.c.bf16 %v764, %v764
        %775 = vrot.lane.b32.xlu0 %v773, 32
        %v776 = vpop.permute.xlu0 %775
        %v778 = vsel %vm669, %v776, 0
        %780 = vmatpush.bf16.msra.mxu0 0
        %781 = vmatpush.bf16.msra.mxu0 0
        %782 = vmatpush.bf16.msra.mxu0 0
        %783 = vmatpush.bf16.msra.mxu0 0
        %784 = vmatpush.bf16.msra.mxu0 0
        %785 = vmatpush.bf16.msra.mxu0 0
        %786 = vmatpush.bf16.msra.mxu0 %v666
        %787 = vmatpush.bf16.msra.mxu0 %v665
        %788 = vmatmul.bf16.gmra.mxu0 %v778
        %v789 = vpop.f32.mrf.mxu0
        %v790 = vadd.f32 0.0, %v789
        %v791 = vpop.f32.mrf.mxu0
        %792 = vdwg.mxu0
        %v793 = vadd.f32 %v772, %v790
        %v794 = vmul.f32 %v793, 0.5
        %v795 = vsel %vm652, %v793, %v794
        %v796 = vtanh.pop %v795
        %v797 = vadd.f32 %v796, 1.0
        %v798 = vmul.f32 %v797, 0.5
        %v799 = vsel %vm652, %v796, %v798
        %v800 = vmul.f32 %v799, %v758
        %802 = vrot.lane.b32.xlu0 %v799, 64
        %v803 = vpop.permute.xlu0 %802
        %v805 = vmul.f32 %v799, %v803
        %807 = vrot.lane.b32.xlu0 %v805, 32
        %v808 = vpop.permute.xlu0 %807
        %v810 = vadd.f32 %v800, %v808
        %v811 = vtanh.pop %v810
        %813 = vrot.lane.b32.xlu0 %v811, 64
        %v814 = vpop.permute.xlu0 %813
        %v816 = vmul.f32 %v799, %v814
        %818 = vrot.lane.b32.xlu0 %v816, 32
        %v819 = vpop.permute.xlu0 %818
        %s821 = scalar_lea.vmem [#allocation2], 16
        %822 = vst.msk [vmem:[%s821] sm:$0xff] %vm669, %v819
        %s823 = scalar_lea.vmem [#allocation3], 24
        %v824 = vld [vmem:[%s823] sm:$0xff]
        %v825 = vpack.c.bf16 %v816, %v816
        %827 = vrot.lane.b32.xlu0 %v825, 32
        %v828 = vpop.permute.xlu0 %827
        %v830 = vsel %vm669, %v828, 0
        %832 = vmatpush.bf16.msra.mxu0 0
        %833 = vmatpush.bf16.msra.mxu0 0
        %834 = vmatpush.bf16.msra.mxu0 0
        %835 = vmatpush.bf16.msra.mxu0 0
        %836 = vmatpush.bf16.msra.mxu0 0
        %837 = vmatpush.bf16.msra.mxu0 0
        %838 = vmatpush.bf16.msra.mxu0 %v666
        %839 = vmatpush.bf16.msra.mxu0 %v665
        %840 = vmatmul.bf16.gmra.mxu0 %v830
        %v841 = vpop.f32.mrf.mxu0
        %v842 = vadd.f32 0.0, %v841
        %v843 = vpop.f32.mrf.mxu0
        %844 = vdwg.mxu0
        %v845 = vadd.f32 %v824, %v842
        %v846 = vmul.f32 %v845, 0.5
        %v847 = vsel %vm652, %v845, %v846
        %v848 = vtanh.pop %v847
        %v849 = vadd.f32 %v848, 1.0
        %v850 = vmul.f32 %v849, 0.5
        %v851 = vsel %vm652, %v848, %v850
        %v852 = vmul.f32 %v851, %v810
        %854 = vrot.lane.b32.xlu0 %v851, 64
        %v855 = vpop.permute.xlu0 %854
        %v857 = vmul.f32 %v851, %v855
        %859 = vrot.lane.b32.xlu0 %v857, 32
        %v860 = vpop.permute.xlu0 %859
        %v862 = vadd.f32 %v852, %v860
        %v863 = vtanh.pop %v862
        %865 = vrot.lane.b32.xlu0 %v863, 64
        %v866 = vpop.permute.xlu0 %865
        %v868 = vmul.f32 %v851, %v866
        %870 = vrot.lane.b32.xlu0 %v868, 32
        %v871 = vpop.permute.xlu0 %870
        %s873 = scalar_lea.vmem [#allocation2], 24
        %874 = vst.msk [vmem:[%s873] sm:$0xff] %vm669, %v871
        %875 = vst.msk [vmem:[#allocation4] sm:$0xff] %vm669, %v871
        %877 = vrot.lane.b32.xlu0 %v862, 96
        %v878 = vpop.permute.xlu0 %877
        %880 = vst.msk [vmem:[#allocation5] sm:$0xff] %vm669, %v878
        %v881 = vld [vmem:[#allocation2] sm:$0xff]
        %v882 = vld [vmem:[#allocation2 + $0x8] sm:$0xff]
        %v883 = vld [vmem:[#allocation2 + $0x10] sm:$0xff]
        %v884 = vld [vmem:[#allocation2 + $0x18] sm:$0xff]
        %v885 = vpack.c.bf16 %v882, %v881
        %v886 = vpack.c.bf16 %v884, %v883
        %v887 = vld [vmem:[#allocation6] sm:$0xf]
        %v888 = vld [vmem:[#allocation6 + $0x4] sm:$0xf]
        %v889 = vld [vmem:[#allocation6 + $0x8] sm:$0xf]
        %v890 = vld [vmem:[#allocation6 + $0xc] sm:$0xf]
        %v891 = vld [vmem:[%s6] sm:$0x1]
        %v893 = vperm.slane %v891, 0
        %v899 = vunpack.c.l.b16 %v887
        %v900 = vunpack.c.l.b16 %v888
        %v901 = vunpack.c.l.b16 %v889
        %v902 = vunpack.c.l.b16 %v890
        %v903 = vpack.c.b16 %v900, %v899
        %v904 = vpack.c.b16 %v902, %v901
        %v908 = vsel %vm669, %v885, 0
        %v911 = vsel %vm669, %v886, 0
        %913 = vmatpush.bf16.msra.mxu0 0
        %914 = vmatpush.bf16.msra.mxu0 0
        %915 = vmatpush.bf16.msra.mxu0 0
        %916 = vmatpush.bf16.msra.mxu0 0
        %917 = vmatpush.bf16.msra.mxu0 0
        %918 = vmatpush.bf16.msra.mxu0 0
        %919 = vmatpush.bf16.msra.mxu0 %v904
        %920 = vmatpush.bf16.msra.mxu0 %v903
        %921 = vmatmul.bf16.gmra.mxu0 %v908
        %v922 = vpop.f32.mrf.mxu0
        %v923 = vadd.f32 %v893, %v922
        %v924 = vpop.f32.mrf.mxu0
        %v925 = vadd.f32 %v893, %v924
        %926 = vmatmul.bf16.gmra.mxu0 %v911
        %v927 = vpop.f32.mrf.mxu0
        %v928 = vadd.f32 %v893, %v927
        %v929 = vpop.f32.mrf.mxu0
        %v930 = vadd.f32 %v893, %v929
        %931 = vdwg.mxu0
        %932 = vst [vmem:[#allocation3] sm:$0xff] %v923
        %933 = vst [vmem:[#allocation3 + $0x8] sm:$0xff] %v925
        %934 = vst [vmem:[#allocation3 + $0x10] sm:$0xff] %v928
        %935 = vst [vmem:[#allocation3 + $0x18] sm:$0xff] %v930
        %v936 = vld [vmem:[#allocation8] sm:$0xf]
        %v937 = vld [vmem:[#allocation8 + $0x4] sm:$0xf]
        %v938 = vld [vmem:[#allocation8 + $0x8] sm:$0xf]
        %v939 = vld [vmem:[#allocation8 + $0xc] sm:$0xf]
        %s940 = scalar_lea.vmem [#allocation4], 8
        %v941 = vld [vmem:[%s940] sm:$0xff]
        %s942 = scalar_lea.vmem [#allocation5], 8
        %v943 = vld [vmem:[%s942] sm:$0xff]
        %v944 = vld [vmem:[#allocation3] sm:$0xff]
        %v945 = vpack.c.bf16 %v941, %v941
        %v950 = vunpack.c.l.b16 %v936
        %v951 = vunpack.c.l.b16 %v937
        %v952 = vunpack.c.l.b16 %v938
        %v953 = vunpack.c.l.b16 %v939
        %v954 = vpack.c.b16 %v951, %v950
        %v955 = vpack.c.b16 %v953, %v952
        %v959 = vsel %vm669, %v945, 0
        %961 = vmatpush.bf16.msra.mxu0 0
        %962 = vmatpush.bf16.msra.mxu0 0
        %963 = vmatpush.bf16.msra.mxu0 0
        %964 = vmatpush.bf16.msra.mxu0 0
        %965 = vmatpush.bf16.msra.mxu0 0
        %966 = vmatpush.bf16.msra.mxu0 0
        %967 = vmatpush.bf16.msra.mxu0 %v955
        %968 = vmatpush.bf16.msra.mxu0 %v954
        %969 = vmatmul.bf16.gmra.mxu0 %v959
        %v970 = vpop.f32.mrf.mxu0
        %v971 = vadd.f32 0.0, %v970
        %v972 = vpop.f32.mrf.mxu0
        %973 = vdwg.mxu0
        %v974 = vadd.f32 %v944, %v971
        %v975 = vmul.f32 %v974, 0.5
        %v976 = vsel %vm652, %v974, %v975
        %v977 = vtanh.pop %v976
        %v978 = vadd.f32 %v977, 1.0
        %v979 = vmul.f32 %v978, 0.5
        %v980 = vsel %vm652, %v977, %v979
        %982 = vrot.lane.b32.xlu0 %v943, 32
        %v983 = vpop.permute.xlu0 %982
        %v985 = vmul.f32 %v980, %v983
        %987 = vrot.lane.b32.xlu0 %v980, 64
        %v988 = vpop.permute.xlu0 %987
        %v990 = vmul.f32 %v980, %v988
        %992 = vrot.lane.b32.xlu0 %v990, 32
        %v993 = vpop.permute.xlu0 %992
        %v995 = vadd.f32 %v985, %v993
        %v996 = vtanh.pop %v995
        %998 = vrot.lane.b32.xlu0 %v996, 64
        %v999 = vpop.permute.xlu0 %998
        %v1001 = vmul.f32 %v980, %v999
        %1003 = vrot.lane.b32.xlu0 %v1001, 32
        %v1004 = vpop.permute.xlu0 %1003
        %1006 = vst.msk [vmem:[#allocation2] sm:$0xff] %vm669, %v1004
        %v1007 = vld [vmem:[%s719] sm:$0xff]
        %v1008 = vpack.c.bf16 %v1001, %v1001
        %1010 = vrot.lane.b32.xlu0 %v1008, 32
        %v1011 = vpop.permute.xlu0 %1010
        %v1013 = vsel %vm669, %v1011, 0
        %1015 = vmatpush.bf16.msra.mxu0 0
        %1016 = vmatpush.bf16.msra.mxu0 0
        %1017 = vmatpush.bf16.msra.mxu0 0
        %1018 = vmatpush.bf16.msra.mxu0 0
        %1019 = vmatpush.bf16.msra.mxu0 0
        %1020 = vmatpush.bf16.msra.mxu0 0
        %1021 = vmatpush.bf16.msra.mxu0 %v955
        %1022 = vmatpush.bf16.msra.mxu0 %v954
        %1023 = vmatmul.bf16.gmra.mxu0 %v1013
        %v1024 = vpop.f32.mrf.mxu0
        %v1025 = vadd.f32 0.0, %v1024
        %v1026 = vpop.f32.mrf.mxu0
        %1027 = vdwg.mxu0
        %v1028 = vadd.f32 %v1007, %v1025
        %v1029 = vmul.f32 %v1028, 0.5
        %v1030 = vsel %vm652, %v1028, %v1029
        %v1031 = vtanh.pop %v1030
        %v1032 = vadd.f32 %v1031, 1.0
        %v1033 = vmul.f32 %v1032, 0.5
        %v1034 = vsel %vm652, %v1031, %v1033
        %v1035 = vmul.f32 %v1034, %v995
        %1037 = vrot.lane.b32.xlu0 %v1034, 64
        %v1038 = vpop.permute.xlu0 %1037
        %v1040 = vmul.f32 %v1034, %v1038
        %1042 = vrot.lane.b32.xlu0 %v1040, 32
        %v1043 = vpop.permute.xlu0 %1042
        %v1045 = vadd.f32 %v1035, %v1043
        %v1046 = vtanh.pop %v1045
        %1048 = vrot.lane.b32.xlu0 %v1046, 64
        %v1049 = vpop.permute.xlu0 %1048
        %v1051 = vmul.f32 %v1034, %v1049
        %1053 = vrot.lane.b32.xlu0 %v1051, 32
        %v1054 = vpop.permute.xlu0 %1053
        %1056 = vst.msk [vmem:[%s769] sm:$0xff] %vm669, %v1054
        %v1057 = vld [vmem:[%s771] sm:$0xff]
        %v1058 = vpack.c.bf16 %v1051, %v1051
        %1060 = vrot.lane.b32.xlu0 %v1058, 32
        %v1061 = vpop.permute.xlu0 %1060
        %v1063 = vsel %vm669, %v1061, 0
        %1065 = vmatpush.bf16.msra.mxu0 0
        %1066 = vmatpush.bf16.msra.mxu0 0
        %1067 = vmatpush.bf16.msra.mxu0 0
        %1068 = vmatpush.bf16.msra.mxu0 0
        %1069 = vmatpush.bf16.msra.mxu0 0
        %1070 = vmatpush.bf16.msra.mxu0 0
        %1071 = vmatpush.bf16.msra.mxu0 %v955
        %1072 = vmatpush.bf16.msra.mxu0 %v954
        %1073 = vmatmul.bf16.gmra.mxu0 %v1063
        %v1074 = vpop.f32.mrf.mxu0
        %v1075 = vadd.f32 0.0, %v1074
        %v1076 = vpop.f32.mrf.mxu0
        %1077 = vdwg.mxu0
        %v1078 = vadd.f32 %v1057, %v1075
        %v1079 = vmul.f32 %v1078, 0.5
        %v1080 = vsel %vm652, %v1078, %v1079
        %v1081 = vtanh.pop %v1080
        %v1082 = vadd.f32 %v1081, 1.0
        %v1083 = vmul.f32 %v1082, 0.5
        %v1084 = vsel %vm652, %v1081, %v1083
        %v1085 = vmul.f32 %v1084, %v1045
        %1087 = vrot.lane.b32.xlu0 %v1084, 64
        %v1088 = vpop.permute.xlu0 %1087
        %v1090 = vmul.f32 %v1084, %v1088
        %1092 = vrot.lane.b32.xlu0 %v1090, 32
        %v1093 = vpop.permute.xlu0 %1092
        %v1095 = vadd.f32 %v1085, %v1093
        %v1096 = vtanh.pop %v1095
        %1098 = vrot.lane.b32.xlu0 %v1096, 64
        %v1099 = vpop.permute.xlu0 %1098
        %v1101 = vmul.f32 %v1084, %v1099
        %1103 = vrot.lane.b32.xlu0 %v1101, 32
        %v1104 = vpop.permute.xlu0 %1103
        %1106 = vst.msk [vmem:[%s821] sm:$0xff] %vm669, %v1104
        %v1107 = vld [vmem:[%s823] sm:$0xff]
        %v1108 = vpack.c.bf16 %v1101, %v1101
        %1110 = vrot.lane.b32.xlu0 %v1108, 32
        %v1111 = vpop.permute.xlu0 %1110
        %v1113 = vsel %vm669, %v1111, 0
        %1115 = vmatpush.bf16.msra.mxu0 0
        %1116 = vmatpush.bf16.msra.mxu0 0
        %1117 = vmatpush.bf16.msra.mxu0 0
        %1118 = vmatpush.bf16.msra.mxu0 0
        %1119 = vmatpush.bf16.msra.mxu0 0
        %1120 = vmatpush.bf16.msra.mxu0 0
        %1121 = vmatpush.bf16.msra.mxu0 %v955
        %1122 = vmatpush.bf16.msra.mxu0 %v954
        %1123 = vmatmul.bf16.gmra.mxu0 %v1113
        %v1124 = vpop.f32.mrf.mxu0
        %v1125 = vadd.f32 0.0, %v1124
        %v1126 = vpop.f32.mrf.mxu0
        %1127 = vdwg.mxu0
        %v1128 = vadd.f32 %v1107, %v1125
        %v1129 = vmul.f32 %v1128, 0.5
        %v1130 = vsel %vm652, %v1128, %v1129
        %v1131 = vtanh.pop %v1130
        %v1132 = vadd.f32 %v1131, 1.0
        %v1133 = vmul.f32 %v1132, 0.5
        %v1134 = vsel %vm652, %v1131, %v1133
        %v1135 = vmul.f32 %v1134, %v1095
        %1137 = vrot.lane.b32.xlu0 %v1134, 64
        %v1138 = vpop.permute.xlu0 %1137
        %v1140 = vmul.f32 %v1134, %v1138
        %1142 = vrot.lane.b32.xlu0 %v1140, 32
        %v1143 = vpop.permute.xlu0 %1142
        %v1145 = vadd.f32 %v1135, %v1143
        %v1146 = vtanh.pop %v1145
        %1148 = vrot.lane.b32.xlu0 %v1146, 64
        %v1149 = vpop.permute.xlu0 %1148
        %v1151 = vmul.f32 %v1134, %v1149
        %1153 = vrot.lane.b32.xlu0 %v1151, 32
        %v1154 = vpop.permute.xlu0 %1153
        %1156 = vst.msk [vmem:[%s873] sm:$0xff] %vm669, %v1154
        %1157 = vst.msk [vmem:[%s940] sm:$0xff] %vm669, %v1154
        %1159 = vrot.lane.b32.xlu0 %v1145, 96
        %v1160 = vpop.permute.xlu0 %1159
        %1162 = vst.msk [vmem:[%s942] sm:$0xff] %vm669, %v1160
        %v1163 = vld [vmem:[#allocation2] sm:$0xff]
        %v1164 = vld [vmem:[#allocation2 + $0x8] sm:$0xff]
        %v1165 = vld [vmem:[#allocation2 + $0x10] sm:$0xff]
        %v1166 = vld [vmem:[#allocation2 + $0x18] sm:$0xff]
        %v1167 = vpack.c.bf16 %v1164, %v1163
        %v1168 = vpack.c.bf16 %v1166, %v1165
        %v1169 = vld [vmem:[#allocation10] sm:$0xf]
        %v1170 = vld [vmem:[#allocation10 + $0x4] sm:$0xf]
        %v1171 = vld [vmem:[#allocation10 + $0x8] sm:$0xf]
        %v1172 = vld [vmem:[#allocation10 + $0xc] sm:$0xf]
        %v1173 = vld [vmem:[%s8] sm:$0x1]
        %v1175 = vperm.slane %v1173, 0
        %v1181 = vunpack.c.l.b16 %v1169
        %v1182 = vunpack.c.l.b16 %v1170
        %v1183 = vunpack.c.l.b16 %v1171
        %v1184 = vunpack.c.l.b16 %v1172
        %v1185 = vpack.c.b16 %v1182, %v1181
        %v1186 = vpack.c.b16 %v1184, %v1183
        %v1190 = vsel %vm669, %v1167, 0
        %v1193 = vsel %vm669, %v1168, 0
        %1195 = vmatpush.bf16.msra.mxu0 0
        %1196 = vmatpush.bf16.msra.mxu0 0
        %1197 = vmatpush.bf16.msra.mxu0 0
        %1198 = vmatpush.bf16.msra.mxu0 0
        %1199 = vmatpush.bf16.msra.mxu0 0
        %1200 = vmatpush.bf16.msra.mxu0 0
        %1201 = vmatpush.bf16.msra.mxu0 %v1186
        %1202 = vmatpush.bf16.msra.mxu0 %v1185
        %1203 = vmatmul.bf16.gmra.mxu0 %v1190
        %v1204 = vpop.f32.mrf.mxu0
        %v1205 = vadd.f32 %v1175, %v1204
        %v1206 = vpop.f32.mrf.mxu0
        %v1207 = vadd.f32 %v1175, %v1206
        %1208 = vmatmul.bf16.gmra.mxu0 %v1193
        %v1209 = vpop.f32.mrf.mxu0
        %v1210 = vadd.f32 %v1175, %v1209
        %v1211 = vpop.f32.mrf.mxu0
        %v1212 = vadd.f32 %v1175, %v1211
        %1213 = vdwg.mxu0
        %v1214 = vmax.f32 %v1205, 0.0
        %v1215 = vmax.f32 %v1207, 0.0
        %v1216 = vmax.f32 %v1210, 0.0
        %v1217 = vmax.f32 %v1212, 0.0
        %v1218 = vpack.c.bf16 %v1215, %v1214
        %v1219 = vpack.c.bf16 %v1217, %v1216
        %v1220 = vld [vmem:[#allocation11] sm:$0xf]
        %v1221 = vld [vmem:[#allocation11 + $0x4] sm:$0xf]
        %v1222 = vld [vmem:[#allocation11 + $0x8] sm:$0xf]
        %v1223 = vld [vmem:[#allocation11 + $0xc] sm:$0xf]
        %v1224 = vld [vmem:[%s10] sm:$0x1]
        %v1226 = vperm.slane %v1224, 0
        %v1232 = vunpack.c.l.b16 %v1220
        %v1233 = vunpack.c.l.b16 %v1221
        %v1234 = vunpack.c.l.b16 %v1222
        %v1235 = vunpack.c.l.b16 %v1223
        %v1236 = vpack.c.b16 %v1233, %v1232
        %v1237 = vpack.c.b16 %v1235, %v1234
        %v1241 = vsel %vm669, %v1218, 0
        %v1244 = vsel %vm669, %v1219, 0
        %1246 = vmatpush.bf16.msra.mxu0 0
        %1247 = vmatpush.bf16.msra.mxu0 0
        %1248 = vmatpush.bf16.msra.mxu0 0
        %1249 = vmatpush.bf16.msra.mxu0 0
        %1250 = vmatpush.bf16.msra.mxu0 0
        %1251 = vmatpush.bf16.msra.mxu0 0
        %1252 = vmatpush.bf16.msra.mxu0 %v1237
        %1253 = vmatpush.bf16.msra.mxu0 %v1236
        %1254 = vmatmul.bf16.gmra.mxu0 %v1241
        %v1255 = vpop.f32.mrf.mxu0
        %v1256 = vadd.f32 %v1226, %v1255
        %v1257 = vpop.f32.mrf.mxu0
        %v1258 = vadd.f32 %v1226, %v1257
        %1259 = vmatmul.bf16.gmra.mxu0 %v1244
        %v1260 = vpop.f32.mrf.mxu0
        %v1261 = vadd.f32 %v1226, %v1260
        %v1262 = vpop.f32.mrf.mxu0
        %v1263 = vadd.f32 %v1226, %v1262
        %1264 = vdwg.mxu0
        %v1265 = vmax.f32 %v1256, 0.0
        %v1266 = vmax.f32 %v1258, 0.0
        %v1267 = vmax.f32 %v1261, 0.0
        %v1268 = vmax.f32 %v1263, 0.0
        %v1269 = vpack.c.bf16 %v1266, %v1265
        %v1270 = vpack.c.bf16 %v1268, %v1267
        %v1271 = vld [vmem:[#allocation13] sm:$0xf]
        %v1272 = vld [vmem:[#allocation13 + $0x4] sm:$0xf]
        %v1273 = vld [vmem:[#allocation13 + $0x8] sm:$0xf]
        %v1274 = vld [vmem:[#allocation13 + $0xc] sm:$0xf]
        %v1275 = vld [vmem:[%s12] sm:$0x1]
        %v1277 = vperm.slane %v1275, 0
        %v1283 = vunpack.c.l.b16 %v1271
        %v1284 = vunpack.c.l.b16 %v1272
        %v1285 = vunpack.c.l.b16 %v1273
        %v1286 = vunpack.c.l.b16 %v1274
        %v1287 = vpack.c.b16 %v1284, %v1283
        %v1288 = vpack.c.b16 %v1286, %v1285
        %v1292 = vsel %vm669, %v1269, 0
        %v1295 = vsel %vm669, %v1270, 0
        %1297 = vmatpush.bf16.msra.mxu0 0
        %1298 = vmatpush.bf16.msra.mxu0 0
        %1299 = vmatpush.bf16.msra.mxu0 0
        %1300 = vmatpush.bf16.msra.mxu0 0
        %1301 = vmatpush.bf16.msra.mxu0 0
        %1302 = vmatpush.bf16.msra.mxu0 0
        %1303 = vmatpush.bf16.msra.mxu0 %v1288
        %1304 = vmatpush.bf16.msra.mxu0 %v1287
        %1305 = vmatmul.bf16.gmra.mxu0 %v1292
        %v1306 = vpop.f32.mrf.mxu0
        %v1307 = vadd.f32 %v1277, %v1306
        %v1308 = vpop.f32.mrf.mxu0
        %v1309 = vadd.f32 %v1277, %v1308
        %1310 = vmatmul.bf16.gmra.mxu0 %v1295
        %v1311 = vpop.f32.mrf.mxu0
        %v1312 = vadd.f32 %v1277, %v1311
        %v1313 = vpop.f32.mrf.mxu0
        %v1314 = vadd.f32 %v1277, %v1313
        %1315 = vdwg.mxu0
        %1316 = vst [vmem:[%s525] sm:$0xff] %v1307
        %1317 = vst [vmem:[%s525 + $0x8] sm:$0xff] %v1309
        %1318 = vst [vmem:[%s525 + $0x10] sm:$0xff] %v1312
        %1319 = vst [vmem:[%s525 + $0x18] sm:$0xff] %v1314
        %s1320 = smul.u32 4, %s27
        %p1321 = scmp.lt.s32.totalorder %s1320, 7
        %s1322 = scalar_select %p1321, %s1320, 7
        %s1323 = smul.addr %s1322, 8
        %s1324 = scalar_lea.vmem %s13, %s1323
        // Predicated region
        $region97: #{itw_lstm_forward.1} parent=71 // pred_check
          %p1325 = pneg %p323
        $region98: #{itw_lstm_forward.1} parent=71 // pred_check_branch
          %1327 = sbr.rel (%p1325) target = $region100
        $region99: #{itw_lstm_forward.1} parent=71 // pred_region
          %s1328 = smul.u32 4, %s27
        $region100: #{itw_lstm_forward.1} parent=71 // pred_fallthru
          _
      $region72: #{itw_lstm_forward.1} parent=5 // pred_fallthru
        _
      %p1329 = scmp.le.s32.totalorder 2, %s22
      // Predicated region
      $region101: #{itw_lstm_forward.1} parent=5 // pred_check
        %p1330 = pneg %p1329
      $region102: #{itw_lstm_forward.1} parent=5 // pred_check_branch
        %1332 = sbr.rel (%p1330) target = $region104
      $region103: #{itw_lstm_forward.1} parent=5 // pred_region
        %s1333 = ssub.s32 %s22, 2
        // Predicated region
        $region105: #{itw_lstm_forward.1} parent=103 // pred_check
          %p1334 = pneg %p329
        $region106: #{itw_lstm_forward.1} parent=103 // pred_check_branch
          %1336 = sbr.rel (%p1334) target = $region108
        $region107: #{itw_lstm_forward.1} parent=103 // pred_region
          %s1337 = smul.u32 4, %s28
          %p1338 = scmp.lt.s32.totalorder %s1337, 7
          %s1339 = scalar_select %p1338, %s1337, 7
          %s1340 = smul.addr %s1339, 8
          %s1341 = scalar_lea.vmem %s13, %s1340
        $region108: #{itw_lstm_forward.1} parent=103 // pred_fallthru
          _
      $region104: #{itw_lstm_forward.1} parent=5 // pred_fallthru
        _
    $region6: #{itw_lstm_forward.1} parent=1 // loop_footer
      %s26 = sadd.s32 1, %s22
    $region7: #{itw_lstm_forward.1} parent=1 // loop_footer_branch
      %21 = sbr.rel target = $region3
    $region8: #{itw_lstm_forward.1} parent=1 // loop_exit
      _
    %1342 = vsyncpa [#allocation7], 1
    %s1343 = scalar_lea.sflag [#allocation7], 1
    %1344 = vsyncpa %s1343, 1
    %1345 = vsyncpa [#allocation9], 1
    %1346 = vsyncpa [#allocation12], 1

</llo_original>
